<compile_context>
chip_gen: v7x
topology: tpu7x:2x2x1
jax: 0.10.0
libtpu: 0.0.40
codegen_flags: <defaults>
</compile_context>

<pallas_src>
import numpy as np
import jax
import jax.numpy as jnp
from jax.experimental import pallas as pl
from jax.experimental.pallas import tpu as pltpu

NEG_SLOPE = 0.01            # nn.LeakyReLU default negative_slope
K = 5                       # conv kernel size
T_TAPS = (K + 2) // 2       # 3 paired-row windows cover all 5 kh taps for both row parities


def _round_up(x, m):
    return (x + m - 1) // m * m


# ------------------------------------------------------------------ kernels
def _conv_pool_bias_lrelu_kernel(x_ref, w_ref, b_ref, o_ref):
    """out = LeakyReLU(maxpool2x2(conv) + bias) for a tile of pooled-output rows.

    x_ref: (Mt, Kc)   bf16  one row per (sample, pooled output row); Kc folds
                            (tap window t, row half h, input col, input chan)
    w_ref: (Kc, 512)  bf16  packed weights; lanes = (row parity, col parity,
                            pooled col, out chan)
    b_ref: (1, 128)   f32   bias per (pooled col, out chan) lane, 0 in padding
    o_ref: (Mt, 128)  bf16  pooled activations
    """
    n2 = w_ref.shape[1] // 2            # 256
    half = n2 // 2                      # 128
    acc = jnp.dot(x_ref[...], w_ref[...], preferred_element_type=jnp.float32)
    m = jnp.maximum(acc[:, :n2], acc[:, n2:])     # pool over conv-row pairs
    m = jnp.maximum(m[:, :half], m[:, half:])     # pool over conv-col pairs
    m = m + b_ref[...]                            # bias commutes with max
    o_ref[...] = jnp.maximum(m, NEG_SLOPE * m).astype(o_ref.dtype)   # LeakyReLU


def _fc_stack_kernel(x_ref, w1_ref, b1_ref, w2_ref, b2_ref, w3_ref, b3_ref, o_ref):
    """Fused fc1+fc2+fc3 with bias + LeakyReLU; all operands resident in VMEM."""
    def lrelu(v):
        return jnp.maximum(v, NEG_SLOPE * v)

    h = lrelu(jnp.dot(x_ref[...], w1_ref[...],
                      preferred_element_type=jnp.float32) + b1_ref[...])
    h = lrelu(jnp.dot(h.astype(jnp.bfloat16), w2_ref[...],
                      preferred_element_type=jnp.float32) + b2_ref[...])
    h = lrelu(jnp.dot(h.astype(jnp.bfloat16), w3_ref[...],
                      preferred_element_type=jnp.float32) + b3_ref[...])
    o_ref[...] = h.astype(o_ref.dtype)


# ------------------------------------------------------------------ wrappers
def _window_cat(x, hp):
    """(N, H, WC) -> (N*hp, T_TAPS*2*WC): pair consecutive rows on lanes, take
    the T_TAPS shifted hp-row windows, concat on lanes.  Pure XLA glue."""
    n, h, wc = x.shape
    p = x.reshape(n, h // 2, 2 * wc)
    xc = jnp.concatenate([p[:, t:t + hp, :] for t in range(T_TAPS)], axis=-1)
    return xc.reshape(n * hp, T_TAPS * 2 * wc)


def conv_pool_lrelu(x_cat, w_cat, bias):
    # x_cat: (M, Kc) bf16, w_cat: (Kc, 512) bf16, bias: (1, 128) f32
    m, kc = x_cat.shape
    n_cols = w_cat.shape[1]
    half = bias.shape[1]
    m_tile = min(512, _round_up(m, 16))        # big M-tiles: >=256 rows per GEMM at batch>=22
    m_pad = _round_up(m, m_tile)
    if m_pad != m:
        x_cat = jnp.pad(x_cat, ((0, m_pad - m), (0, 0)))
    out = pl.pallas_call(
        _conv_pool_bias_lrelu_kernel,
        out_shape=jax.ShapeDtypeStruct((m_pad, half), jnp.bfloat16),
        grid=(m_pad // m_tile,),
        in_specs=[
            pl.BlockSpec((m_tile, kc), lambda i: (i, 0)),    # activation rows
            pl.BlockSpec((kc, n_cols), lambda i: (0, 0)),    # weights resident
            pl.BlockSpec((1, half), lambda i: (0, 0)),
        ],
        out_specs=pl.BlockSpec((m_tile, half), lambda i: (i, 0)),
        compiler_params=pltpu.CompilerParams(
            dimension_semantics=("parallel",)),              # megacore-shardable
    )(x_cat, w_cat, bias)
    return out[:m]


def fc_stack_lrelu(x, w1, b1, w2, b2, w3, b3, n_out=10):
    # x: (N, 512) bf16; weights pre-packed (512,128)/(128,128)/(128,128) bf16
    n, kin = x.shape
    m_tile = min(256, _round_up(n, 16))        # multiple of 16 (bf16 packing), <= 256
    m_pad = _round_up(n, m_tile)
    if m_pad != n:
        x = jnp.pad(x, ((0, m_pad - n), (0, 0)))
    out = pl.pallas_call(
        _fc_stack_kernel,
        out_shape=jax.ShapeDtypeStruct((m_pad, w3.shape[1]), jnp.float32),
        grid=(m_pad // m_tile,),
        in_specs=[
            pl.BlockSpec((m_tile, kin), lambda i: (i, 0)),
            pl.BlockSpec(w1.shape, lambda i: (0, 0)),
            pl.BlockSpec(b1.shape, lambda i: (0, 0)),
            pl.BlockSpec(w2.shape, lambda i: (0, 0)),
            pl.BlockSpec(b2.shape, lambda i: (0, 0)),
            pl.BlockSpec(w3.shape, lambda i: (0, 0)),
            pl.BlockSpec(b3.shape, lambda i: (0, 0)),
        ],
        out_specs=pl.BlockSpec((m_tile, w3.shape[1]), lambda i: (i, 0)),
        compiler_params=pltpu.CompilerParams(
            dimension_semantics=("parallel",)),
    )(x, w1, b1, w2, b2, w3, b3)
    return out[:n, :n_out]


# ------------------------------------------------------------------ weight packing (once, at init)
def _pack_conv(w_t, b_t, *, in_w_slots, in_c_slots, out_w, out_c_slots, out_w_slots):
    """PyTorch Conv2d weight (Cout,Cin,5,5) -> (T_TAPS*2*WC, 512) GEMM weight.

    K row  = t*(2*WC) + h*WC + wi*in_c_slots + ci      (WC = in_w_slots*in_c_slots)
    column = rp*256 + cp*128 + pw*out_c_slots + co
    entry  = w[co, ci, kh=2t+h-rp, kw=wi-(2pw+cp)]  (0 outside the 5x5 band / padding)
    Bias replicated per pooled column; padded lanes stay exactly 0 so
    LeakyReLU(0)=0 keeps padding zero for the next layer.
    """
    w = np.asarray(w_t, np.float32)
    b = np.asarray(b_t, np.float32)
    cout, cin = w.shape[0], w.shape[1]
    wc = in_w_slots * in_c_slots
    half = out_w_slots * out_c_slots               # 128
    pooled_w = out_w // 2
    wp = np.zeros((T_TAPS * 2 * wc, 4 * half), np.float32)
    for t in range(T_TAPS):
        for h in (0, 1):
            for rp in (0, 1):
                kh = 2 * t + h - rp
                if not 0 <= kh < K:
                    continue
                for cp in (0, 1):
                    for pw in range(pooled_w):
                        col_out = 2 * pw + cp                      # conv output column
                        c0 = rp * 2 * half + cp * half + pw * out_c_slots
                        for kw in range(K):
                            wi = col_out + kw                      # input column slot
                            if wi >= in_w_slots:
                                continue
                            r0 = t * 2 * wc + h * wc + wi * in_c_slots
                            wp[r0:r0 + cin, c0:c0 + cout] = w[:, :, kh, kw].T
    bias = np.zeros((1, half), np.float32)
    for pw in range(pooled_w):
        bias[0, pw * out_c_slots:pw * out_c_slots + cout] = b
    return jnp.asarray(wp, jnp.bfloat16), jnp.asarray(bias, jnp.float32)


def _fc1_perm():
    # packed row index = ph*128 + pw*16 + co  (pw in [0,8), real for pw<4)
    # PyTorch x.view(-1, 16*4*4) index = co*16 + ph*4 + pw
    perm = np.full((4 * 128,), -1, np.int64)
    for ph in range(4):
        for pw in range(4):
            for co in range(16):
                perm[ph * 128 + pw * 16 + co] = co * 16 + ph * 4 + pw
    return perm


def _pack_fc(w_t, b_t, k_pad, n_pad, perm=None):
    """PyTorch Linear (out, in) -> (k_pad, n_pad) bf16 weight + (1, n_pad) f32 bias."""
    w = np.asarray(w_t, np.float32)
    b = np.asarray(b_t, np.float32)
    n_out, n_in = w.shape
    wp = np.zeros((k_pad, n_pad), np.float32)
    if perm is None:
        wp[:n_in, :n_out] = w.T
    else:
        for r, src in enumerate(perm):
            if src >= 0:
                wp[r, :n_out] = w[:, src]
    bp = np.zeros((1, n_pad), np.float32)
    bp[0, :n_out] = b
    return jnp.asarray(wp, jnp.bfloat16), jnp.asarray(bp, jnp.float32)


def pack_params(tp):
    c1_w, c1_b = _pack_conv(tp["conv1_w"], tp["conv1_b"],
                            in_w_slots=28, in_c_slots=1, out_w=24,
                            out_c_slots=8, out_w_slots=16)
    c2_w, c2_b = _pack_conv(tp["conv2_w"], tp["conv2_b"],
                            in_w_slots=16, in_c_slots=8, out_w=8,
                            out_c_slots=16, out_w_slots=8)
    f1_w, f1_b = _pack_fc(tp["fc1_w"], tp["fc1_b"], 512, 128, perm=_fc1_perm())
    f2_w, f2_b = _pack_fc(tp["fc2_w"], tp["fc2_b"], 128, 128)
    f3_w, f3_b = _pack_fc(tp["fc3_w"], tp["fc3_b"], 128, 128)
    return {"c1_w": c1_w, "c1_b": c1_b, "c2_w": c2_w, "c2_b": c2_b,
            "f1_w": f1_w, "f1_b": f1_b, "f2_w": f2_w, "f2_b": f2_b,
            "f3_w": f3_w, "f3_b": f3_b}


def init_torch_params(key):
    ks = jax.random.split(key, 10)

    def rnd(k, shape, fan_in):
        return jax.random.normal(k, shape, jnp.float32) / np.sqrt(float(fan_in))

    return {  # same layouts as the nn.Module parameters
        "conv1_w": rnd(ks[0], (6, 1, 5, 5), 25),   "conv1_b": rnd(ks[1], (6,), 25),
        "conv2_w": rnd(ks[2], (16, 6, 5, 5), 150), "conv2_b": rnd(ks[3], (16,), 150),
        "fc1_w": rnd(ks[4], (120, 256), 256),      "fc1_b": rnd(ks[5], (120,), 256),
        "fc2_w": rnd(ks[6], (84, 120), 120),       "fc2_b": rnd(ks[7], (84,), 120),
        "fc3_w": rnd(ks[8], (10, 84), 84),         "fc3_b": rnd(ks[9], (10,), 84),
    }


# ------------------------------------------------------------------ forward
def lenet_forward(params, x_nchw):
    # x_nchw: (N, 1, 28, 28) f32
    n = x_nchw.shape[0]
    x = x_nchw.reshape(n, 28, 28).astype(jnp.bfloat16)
    x = _window_cat(x, 12)                                     # (n*12, 168)
    y = conv_pool_lrelu(x, params["c1_w"], params["c1_b"])     # (n*12, 128) bf16
    y = _window_cat(y.reshape(n, 12, 128), 4)                  # (n*4, 768)
    y = conv_pool_lrelu(y, params["c2_w"], params["c2_b"])     # (n*4, 128) bf16
    y = y.reshape(n, 4 * 128)                                  # matches fc1 packed row order
    return fc_stack_lrelu(y, params["f1_w"], params["f1_b"],
                          params["f2_w"], params["f2_b"],
                          params["f3_w"], params["f3_b"], n_out=10)

# TODO(synk): group_LASSO (weight-norm regularizer) is not part of forward(); not implemented.
# TODO(synk): whole-forward single-kernel fusion skipped: the inter-layer row-pair/window
#             shuffles are kept as cheap XLA glue to avoid in-kernel relayout ops.


# ------------------------------------------------------------------ reference (regression test)
def _reference_forward(tp, x_nchw):
    """Pure-XLA reference mirroring the PyTorch module, with the same bf16
    rounding of weights / inter-layer activations the kernels use."""
    def q(a):
        return jnp.asarray(a, jnp.float32).astype(jnp.bfloat16).astype(jnp.float32)

    def lrelu(v):
        return jnp.maximum(v, NEG_SLOPE * v)

    def conv_block(x, w, b):
        y = jax.lax.conv_general_dilated(
            q(x), q(w), window_strides=(1, 1), padding="VALID",
            dimension_numbers=("NCHW", "OIHW", "NCHW"))
        y = lrelu(y + b.reshape(1, -1, 1, 1))
        return jax.lax.reduce_window(y, -jnp.inf, jax.lax.max,
                                     (1, 1, 2, 2), (1, 1, 2, 2), "VALID")

    x = conv_block(x_nchw, tp["conv1_w"], tp["conv1_b"])
    x = conv_block(x, tp["conv2_w"], tp["conv2_b"])
    x = x.reshape(x.shape[0], -1)
    x = lrelu(q(x) @ q(tp["fc1_w"]).T + tp["fc1_b"])
    x = lrelu(q(x) @ q(tp["fc2_w"]).T + tp["fc2_b"])
    x = lrelu(q(x) @ q(tp["fc3_w"]).T + tp["fc3_b"])
    return x


if __name__ == "__main__":
    key = jax.random.PRNGKey(0)
    pkey, xkey = jax.random.split(key)
    torch_like = init_torch_params(pkey)
    params = pack_params(torch_like)
    # 28x28 input is what the module implies (16*4*4 == 256 fc1 input)
    x = jax.random.normal(xkey, (2, 1, 28, 28), jnp.float32)

    out = jax.jit(lenet_forward)(params, x)
    jax.block_until_ready(out)
    assert out.shape == (2, 10) and out.dtype == jnp.float32

    ref = _reference_forward(torch_like, x)
    err = float(jnp.max(jnp.abs(out - ref)))
    assert err < 1e-1, f"kernel vs reference mismatch: max abs err {err}"
    print("KERNEL_OK")
</pallas_src>

<mosaic_0001>
module attributes {stable_mosaic.version = 11 : i64} {
  func.func @_conv_pool_bias_lrelu_kernel(%arg0: i32, %arg1: memref<16x768xbf16, #tpu.memory_space<vmem>>, %arg2: memref<768x512xbf16, #tpu.memory_space<vmem>>, %arg3: memref<1x128xf32, #tpu.memory_space<vmem>>, %arg4: memref<16x128xbf16, #tpu.memory_space<vmem>>) attributes {dimension_semantics = [#tpu.dimension_semantics<parallel>], iteration_bounds = array<i64: 1>, scalar_prefetch = 0 : i64, scratch_operands = 0 : i64, tpu.core_type = #tpu.core_type<tc>, window_params = [{transform_indices = @transform_0, window_bounds = array<i64: 16, 768>}, {pipeline_mode = #tpu.pipeline_mode<synchronous>, transform_indices = @transform_1, window_bounds = array<i64: 768, 512>}, {pipeline_mode = #tpu.pipeline_mode<synchronous>, transform_indices = @transform_2, window_bounds = array<i64: 1, 128>}, {transform_indices = @transform_3, window_bounds = array<i64: 16, 128>}]} {
    %c0 = arith.constant 0 : index
    %c0_0 = arith.constant 0 : index
    %0 = vector.load %arg1[%c0, %c0_0] : memref<16x768xbf16, #tpu.memory_space<vmem>>, vector<16x768xbf16>
    %c0_1 = arith.constant 0 : index
    %c0_2 = arith.constant 0 : index
    %1 = vector.load %arg2[%c0_1, %c0_2] : memref<768x512xbf16, #tpu.memory_space<vmem>>, vector<768x512xbf16>
    %cst = arith.constant dense<0.000000e+00> : vector<16x512xf32>
    %2 = tpu.matmul %0, %1, %cst {dimension_numbers = #tpu.dot_dimension_numbers<[1], [0], [0], [1], [0, 0, 1, 1], [], []>} : vector<16x768xbf16>, vector<768x512xbf16>, vector<16x512xf32> -> vector<16x512xf32>
    %3 = vector.extract_strided_slice %2 {offsets = [0, 0], sizes = [16, 256], strides = [1, 1]} : vector<16x512xf32> to vector<16x256xf32>
    %4 = vector.extract_strided_slice %2 {offsets = [0, 256], sizes = [16, 256], strides = [1, 1]} : vector<16x512xf32> to vector<16x256xf32>
    %5 = arith.maximumf %3, %4 : vector<16x256xf32>
    %6 = vector.extract_strided_slice %5 {offsets = [0, 0], sizes = [16, 128], strides = [1, 1]} : vector<16x256xf32> to vector<16x128xf32>
    %7 = vector.extract_strided_slice %5 {offsets = [0, 128], sizes = [16, 128], strides = [1, 1]} : vector<16x256xf32> to vector<16x128xf32>
    %8 = arith.maximumf %6, %7 : vector<16x128xf32>
    %c0_3 = arith.constant 0 : index
    %c0_4 = arith.constant 0 : index
    %9 = vector.load %arg3[%c0_3, %c0_4] : memref<1x128xf32, #tpu.memory_space<vmem>>, vector<1x128xf32>
    %10 = vector.broadcast %9 : vector<1x128xf32> to vector<16x128xf32>
    %11 = arith.addf %8, %10 : vector<16x128xf32>
    %cst_5 = arith.constant 0.00999999977 : f32
    %12 = vector.broadcast %cst_5 : f32 to vector<16x128xf32>
    %13 = arith.mulf %12, %11 : vector<16x128xf32>
    %14 = arith.maximumf %11, %13 : vector<16x128xf32>
    %15 = arith.truncf %14 : vector<16x128xf32> to vector<16x128xbf16>
    %c0_6 = arith.constant 0 : index
    %c0_7 = arith.constant 0 : index
    %16 = vector.load %arg4[%c0_6, %c0_7] : memref<16x128xbf16, #tpu.memory_space<vmem>>, vector<16x128xbf16>
    tpu.vector_store %arg4[%c0_6, %c0_7], %15 {strides = array<i32>} : memref<16x128xbf16, #tpu.memory_space<vmem>>, vector<16x128xbf16>,
    return
  }
  func.func @transform_0(%arg0: i32) -> (i32, i32) {
    %c0_i32 = arith.constant 0 : i32
    %c0_i32_0 = arith.constant 0 : i32
    return %arg0, %c0_i32 : i32, i32
  }
  func.func @transform_1(%arg0: i32) -> (i32, i32) {
    %c0_i32 = arith.constant 0 : i32
    %c0_i32_0 = arith.constant 0 : i32
    %c0_i32_1 = arith.constant 0 : i32
    return %c0_i32, %c0_i32_0 : i32, i32
  }
  func.func @transform_2(%arg0: i32) -> (i32, i32) {
    %c0_i32 = arith.constant 0 : i32
    %c0_i32_0 = arith.constant 0 : i32
    %c0_i32_1 = arith.constant 0 : i32
    return %c0_i32, %c0_i32_0 : i32, i32
  }
  func.func @transform_3(%arg0: i32) -> (i32, i32) {
    %c0_i32 = arith.constant 0 : i32
    %c0_i32_0 = arith.constant 0 : i32
    return %arg0, %c0_i32 : i32, i32
  }
}

module attributes {stable_mosaic.version = 11 : i64} {
  func.func @_conv_pool_bias_lrelu_kernel(%arg0: i32, %arg1: memref<32x168xbf16, #tpu.memory_space<vmem>>, %arg2: memref<168x512xbf16, #tpu.memory_space<vmem>>, %arg3: memref<1x128xf32, #tpu.memory_space<vmem>>, %arg4: memref<32x128xbf16, #tpu.memory_space<vmem>>) attributes {dimension_semantics = [#tpu.dimension_semantics<parallel>], iteration_bounds = array<i64: 1>, scalar_prefetch = 0 : i64, scratch_operands = 0 : i64, tpu.core_type = #tpu.core_type<tc>, window_params = [{transform_indices = @transform_0, window_bounds = array<i64: 32, 168>}, {pipeline_mode = #tpu.pipeline_mode<synchronous>, transform_indices = @transform_1, window_bounds = array<i64: 168, 512>}, {pipeline_mode = #tpu.pipeline_mode<synchronous>, transform_indices = @transform_2, window_bounds = array<i64: 1, 128>}, {transform_indices = @transform_3, window_bounds = array<i64: 32, 128>}]} {
    %c0 = arith.constant 0 : index
    %c0_0 = arith.constant 0 : index
    %0 = vector.load %arg1[%c0, %c0_0] : memref<32x168xbf16, #tpu.memory_space<vmem>>, vector<32x168xbf16>
    %c0_1 = arith.constant 0 : index
    %c0_2 = arith.constant 0 : index
    %1 = vector.load %arg2[%c0_1, %c0_2] : memref<168x512xbf16, #tpu.memory_space<vmem>>, vector<168x512xbf16>
    %cst = arith.constant dense<0.000000e+00> : vector<32x512xf32>
    %2 = tpu.matmul %0, %1, %cst {dimension_numbers = #tpu.dot_dimension_numbers<[1], [0], [0], [1], [0, 0, 1, 1], [], []>} : vector<32x168xbf16>, vector<168x512xbf16>, vector<32x512xf32> -> vector<32x512xf32>
    %3 = vector.extract_strided_slice %2 {offsets = [0, 0], sizes = [32, 256], strides = [1, 1]} : vector<32x512xf32> to vector<32x256xf32>
    %4 = vector.extract_strided_slice %2 {offsets = [0, 256], sizes = [32, 256], strides = [1, 1]} : vector<32x512xf32> to vector<32x256xf32>
    %5 = arith.maximumf %3, %4 : vector<32x256xf32>
    %6 = vector.extract_strided_slice %5 {offsets = [0, 0], sizes = [32, 128], strides = [1, 1]} : vector<32x256xf32> to vector<32x128xf32>
    %7 = vector.extract_strided_slice %5 {offsets = [0, 128], sizes = [32, 128], strides = [1, 1]} : vector<32x256xf32> to vector<32x128xf32>
    %8 = arith.maximumf %6, %7 : vector<32x128xf32>
    %c0_3 = arith.constant 0 : index
    %c0_4 = arith.constant 0 : index
    %9 = vector.load %arg3[%c0_3, %c0_4] : memref<1x128xf32, #tpu.memory_space<vmem>>, vector<1x128xf32>
    %10 = vector.broadcast %9 : vector<1x128xf32> to vector<32x128xf32>
    %11 = arith.addf %8, %10 : vector<32x128xf32>
    %cst_5 = arith.constant 0.00999999977 : f32
    %12 = vector.broadcast %cst_5 : f32 to vector<32x128xf32>
    %13 = arith.mulf %12, %11 : vector<32x128xf32>
    %14 = arith.maximumf %11, %13 : vector<32x128xf32>
    %15 = arith.truncf %14 : vector<32x128xf32> to vector<32x128xbf16>
    %c0_6 = arith.constant 0 : index
    %c0_7 = arith.constant 0 : index
    %16 = vector.load %arg4[%c0_6, %c0_7] : memref<32x128xbf16, #tpu.memory_space<vmem>>, vector<32x128xbf16>
    tpu.vector_store %arg4[%c0_6, %c0_7], %15 {strides = array<i32>} : memref<32x128xbf16, #tpu.memory_space<vmem>>, vector<32x128xbf16>,
    return
  }
  func.func @transform_0(%arg0: i32) -> (i32, i32) {
    %c0_i32 = arith.constant 0 : i32
    %c0_i32_0 = arith.constant 0 : i32
    return %arg0, %c0_i32 : i32, i32
  }
  func.func @transform_1(%arg0: i32) -> (i32, i32) {
    %c0_i32 = arith.constant 0 : i32
    %c0_i32_0 = arith.constant 0 : i32
    %c0_i32_1 = arith.constant 0 : i32
    return %c0_i32, %c0_i32_0 : i32, i32
  }
  func.func @transform_2(%arg0: i32) -> (i32, i32) {
    %c0_i32 = arith.constant 0 : i32
    %c0_i32_0 = arith.constant 0 : i32
    %c0_i32_1 = arith.constant 0 : i32
    return %c0_i32, %c0_i32_0 : i32, i32
  }
  func.func @transform_3(%arg0: i32) -> (i32, i32) {
    %c0_i32 = arith.constant 0 : i32
    %c0_i32_0 = arith.constant 0 : i32
    return %arg0, %c0_i32 : i32, i32
  }
}

module attributes {stable_mosaic.version = 11 : i64} {
  func.func @_fc_stack_kernel(%arg0: i32, %arg1: memref<16x512xbf16, #tpu.memory_space<vmem>>, %arg2: memref<512x128xbf16, #tpu.memory_space<vmem>>, %arg3: memref<1x128xf32, #tpu.memory_space<vmem>>, %arg4: memref<128x128xbf16, #tpu.memory_space<vmem>>, %arg5: memref<1x128xf32, #tpu.memory_space<vmem>>, %arg6: memref<128x128xbf16, #tpu.memory_space<vmem>>, %arg7: memref<1x128xf32, #tpu.memory_space<vmem>>, %arg8: memref<16x128xf32, #tpu.memory_space<vmem>>) attributes {dimension_semantics = [#tpu.dimension_semantics<parallel>], iteration_bounds = array<i64: 1>, scalar_prefetch = 0 : i64, scratch_operands = 0 : i64, tpu.core_type = #tpu.core_type<tc>, window_params = [{transform_indices = @transform_0, window_bounds = array<i64: 16, 512>}, {pipeline_mode = #tpu.pipeline_mode<synchronous>, transform_indices = @transform_1, window_bounds = array<i64: 512, 128>}, {pipeline_mode = #tpu.pipeline_mode<synchronous>, transform_indices = @transform_2, window_bounds = array<i64: 1, 128>}, {pipeline_mode = #tpu.pipeline_mode<synchronous>, transform_indices = @transform_3, window_bounds = array<i64: 128, 128>}, {pipeline_mode = #tpu.pipeline_mode<synchronous>, transform_indices = @transform_4, window_bounds = array<i64: 1, 128>}, {pipeline_mode = #tpu.pipeline_mode<synchronous>, transform_indices = @transform_5, window_bounds = array<i64: 128, 128>}, {pipeline_mode = #tpu.pipeline_mode<synchronous>, transform_indices = @transform_6, window_bounds = array<i64: 1, 128>}, {transform_indices = @transform_7, window_bounds = array<i64: 16, 128>}]} {
    %c0 = arith.constant 0 : index
    %c0_0 = arith.constant 0 : index
    %0 = vector.load %arg1[%c0, %c0_0] : memref<16x512xbf16, #tpu.memory_space<vmem>>, vector<16x512xbf16>
    %c0_1 = arith.constant 0 : index
    %c0_2 = arith.constant 0 : index
    %1 = vector.load %arg2[%c0_1, %c0_2] : memref<512x128xbf16, #tpu.memory_space<vmem>>, vector<512x128xbf16>
    %cst = arith.constant dense<0.000000e+00> : vector<16x128xf32>
    %2 = tpu.matmul %0, %1, %cst {dimension_numbers = #tpu.dot_dimension_numbers<[1], [0], [0], [1], [0, 0, 1, 1], [], []>} : vector<16x512xbf16>, vector<512x128xbf16>, vector<16x128xf32> -> vector<16x128xf32>
    %c0_3 = arith.constant 0 : index
    %c0_4 = arith.constant 0 : index
    %3 = vector.load %arg3[%c0_3, %c0_4] : memref<1x128xf32, #tpu.memory_space<vmem>>, vector<1x128xf32>
    %4 = vector.broadcast %3 : vector<1x128xf32> to vector<16x128xf32>
    %5 = arith.addf %2, %4 : vector<16x128xf32>
    %cst_5 = arith.constant 0.00999999977 : f32
    %6 = vector.broadcast %cst_5 : f32 to vector<16x128xf32>
    %7 = arith.mulf %6, %5 : vector<16x128xf32>
    %8 = arith.maximumf %5, %7 : vector<16x128xf32>
    %9 = arith.truncf %8 : vector<16x128xf32> to vector<16x128xbf16>
    %c0_6 = arith.constant 0 : index
    %c0_7 = arith.constant 0 : index
    %10 = vector.load %arg4[%c0_6, %c0_7] : memref<128x128xbf16, #tpu.memory_space<vmem>>, vector<128x128xbf16>
    %cst_8 = arith.constant dense<0.000000e+00> : vector<16x128xf32>
    %11 = tpu.matmul %9, %10, %cst_8 {dimension_numbers = #tpu.dot_dimension_numbers<[1], [0], [0], [1], [0, 0, 1, 1], [], []>} : vector<16x128xbf16>, vector<128x128xbf16>, vector<16x128xf32> -> vector<16x128xf32>
    %c0_9 = arith.constant 0 : index
    %c0_10 = arith.constant 0 : index
    %12 = vector.load %arg5[%c0_9, %c0_10] : memref<1x128xf32, #tpu.memory_space<vmem>>, vector<1x128xf32>
    %13 = vector.broadcast %12 : vector<1x128xf32> to vector<16x128xf32>
    %14 = arith.addf %11, %13 : vector<16x128xf32>
    %cst_11 = arith.constant 0.00999999977 : f32
    %15 = vector.broadcast %cst_11 : f32 to vector<16x128xf32>
    %16 = arith.mulf %15, %14 : vector<16x128xf32>
    %17 = arith.maximumf %14, %16 : vector<16x128xf32>
    %18 = arith.truncf %17 : vector<16x128xf32> to vector<16x128xbf16>
    %c0_12 = arith.constant 0 : index
    %c0_13 = arith.constant 0 : index
    %19 = vector.load %arg6[%c0_12, %c0_13] : memref<128x128xbf16, #tpu.memory_space<vmem>>, vector<128x128xbf16>
    %cst_14 = arith.constant dense<0.000000e+00> : vector<16x128xf32>
    %20 = tpu.matmul %18, %19, %cst_14 {dimension_numbers = #tpu.dot_dimension_numbers<[1], [0], [0], [1], [0, 0, 1, 1], [], []>} : vector<16x128xbf16>, vector<128x128xbf16>, vector<16x128xf32> -> vector<16x128xf32>
    %c0_15 = arith.constant 0 : index
    %c0_16 = arith.constant 0 : index
    %21 = vector.load %arg7[%c0_15, %c0_16] : memref<1x128xf32, #tpu.memory_space<vmem>>, vector<1x128xf32>
    %22 = vector.broadcast %21 : vector<1x128xf32> to vector<16x128xf32>
    %23 = arith.addf %20, %22 : vector<16x128xf32>
    %cst_17 = arith.constant 0.00999999977 : f32
    %24 = vector.broadcast %cst_17 : f32 to vector<16x128xf32>
    %25 = arith.mulf %24, %23 : vector<16x128xf32>
    %26 = arith.maximumf %23, %25 : vector<16x128xf32>
    %c0_18 = arith.constant 0 : index
    %c0_19 = arith.constant 0 : index
    %27 = vector.load %arg8[%c0_18, %c0_19] : memref<16x128xf32, #tpu.memory_space<vmem>>, vector<16x128xf32>
    tpu.vector_store %arg8[%c0_18, %c0_19], %26 {strides = array<i32>} : memref<16x128xf32, #tpu.memory_space<vmem>>, vector<16x128xf32>,
    return
  }
  func.func @transform_0(%arg0: i32) -> (i32, i32) {
    %c0_i32 = arith.constant 0 : i32
    %c0_i32_0 = arith.constant 0 : i32
    return %arg0, %c0_i32 : i32, i32
  }
  func.func @transform_1(%arg0: i32) -> (i32, i32) {
    %c0_i32 = arith.constant 0 : i32
    %c0_i32_0 = arith.constant 0 : i32
    %c0_i32_1 = arith.constant 0 : i32
    return %c0_i32, %c0_i32_0 : i32, i32
  }
  func.func @transform_2(%arg0: i32) -> (i32, i32) {
    %c0_i32 = arith.constant 0 : i32
    %c0_i32_0 = arith.constant 0 : i32
    %c0_i32_1 = arith.constant 0 : i32
    return %c0_i32, %c0_i32_0 : i32, i32
  }
  func.func @transform_3(%arg0: i32) -> (i32, i32) {
    %c0_i32 = arith.constant 0 : i32
    %c0_i32_0 = arith.constant 0 : i32
    %c0_i32_1 = arith.constant 0 : i32
    return %c0_i32, %c0_i32_0 : i32, i32
  }
  func.func @transform_4(%arg0: i32) -> (i32, i32) {
    %c0_i32 = arith.constant 0 : i32
    %c0_i32_0 = arith.constant 0 : i32
    %c0_i32_1 = arith.constant 0 : i32
    return %c0_i32, %c0_i32_0 : i32, i32
  }
  func.func @transform_5(%arg0: i32) -> (i32, i32) {
    %c0_i32 = arith.constant 0 : i32
    %c0_i32_0 = arith.constant 0 : i32
    %c0_i32_1 = arith.constant 0 : i32
    return %c0_i32, %c0_i32_0 : i32, i32
  }
  func.func @transform_6(%arg0: i32) -> (i32, i32) {
    %c0_i32 = arith.constant 0 : i32
    %c0_i32_0 = arith.constant 0 : i32
    %c0_i32_1 = arith.constant 0 : i32
    return %c0_i32, %c0_i32_0 : i32, i32
  }
  func.func @transform_7(%arg0: i32) -> (i32, i32) {
    %c0_i32 = arith.constant 0 : i32
    %c0_i32_0 = arith.constant 0 : i32
    return %arg0, %c0_i32 : i32, i32
  }
}

</mosaic_0001>

<llo_original>
// kernel: lenet_forward.3
$region0: #{lenet_forward.3}
  #allocation0 [shape = 'u32[]', space=smem, size = 0x4, offset = 0x4, fixed_abs, tag = 'smem constant byte address 0x4 - core index']
  #allocation1 [shape = 'u32[144,128]{1,0:T(1,128)}', space=vmem, size = 0x12000, scoped, tag = 'internal scratch']
  %s0 = inlined_call_operand.vmem [shape: bf16[32,168], index: 0, kind: input, shape index: {}]
  %s1 = inlined_call_operand.vmem [shape: bf16[168,512], index: 1, kind: input, shape index: {}]
  %s2 = inlined_call_operand.vmem [shape: f32[1,128], index: 2, kind: input, shape index: {}]
  %s3 = inlined_call_operand.vmem [shape: bf16[32,128], index: 3, kind: output, shape index: {}]
  %s4 = sld [smem:[#allocation0]]
  $region22: #{lenet_forward.3} parent=0
    _
  %s6 = ssub.s32 1, %s4
  %s7 = scalar_select 0, %s6, %s4
  // Predicated region
  $region2: #{lenet_forward.3} parent=0 // pred_check
    _
  $region3: #{lenet_forward.3} parent=0 // pred_check_branch
    %9 = sbr.rel (0) target = $region5
  $region4: #{lenet_forward.3} parent=0 // pred_region
    _
  $region5: #{lenet_forward.3} parent=0 // pred_fallthru
    _
  // Predicated region
  $region6: #{lenet_forward.3} parent=0 // pred_check
    _
  $region7: #{lenet_forward.3} parent=0 // pred_check_branch
    %11 = sbr.rel (0) target = $region9
  $region8: #{lenet_forward.3} parent=0 // pred_region
    _
  $region9: #{lenet_forward.3} parent=0 // pred_fallthru
    _
  // Predicated region
  $region10: #{lenet_forward.3} parent=0 // pred_check
    _
  $region11: #{lenet_forward.3} parent=0 // pred_check_branch
    %13 = sbr.rel (0) target = $region13
  $region12: #{lenet_forward.3} parent=0 // pred_region
    _
  $region13: #{lenet_forward.3} parent=0 // pred_fallthru
    _
  %v15 = vld [vmem:[%s0] sm:$0xff]
  %v16 = vld [vmem:[%s0 + $0x8] sm:$0xff]
  %v17 = vld [vmem:[%s0 + $0x10] sm:$0xff]
  %v18 = vld [vmem:[%s0 + $0x18] sm:$0xff]
  %v19 = vld [vmem:[%s1] sm:$0xff]
  %v20 = vld [vmem:[%s1 + $0x8] sm:$0xff]
  %v21 = vld [vmem:[%s1 + $0x10] sm:$0xff]
  %v22 = vld [vmem:[%s1 + $0x18] sm:$0xff]
  %v23 = vld [vmem:[%s1 + $0x20] sm:$0xff]
  %v24 = vld [vmem:[%s1 + $0x28] sm:$0xff]
  %v25 = vld [vmem:[%s1 + $0x30] sm:$0xff]
  %v26 = vld [vmem:[%s1 + $0x38] sm:$0xff]
  %v27 = vld [vmem:[%s1 + $0x40] sm:$0xff]
  %v28 = vld [vmem:[%s1 + $0x48] sm:$0xff]
  %v29 = vld [vmem:[%s1 + $0x50] sm:$0xff]
  %v30 = vld [vmem:[%s1 + $0x58] sm:$0xff]
  %v31 = vld [vmem:[%s1 + $0x60] sm:$0xff]
  %v32 = vld [vmem:[%s1 + $0x68] sm:$0xff]
  %v33 = vld [vmem:[%s1 + $0x70] sm:$0xff]
  %v34 = vld [vmem:[%s1 + $0x78] sm:$0xff]
  %v35 = vld [vmem:[%s1 + $0x80] sm:$0xff]
  %v36 = vld [vmem:[%s1 + $0x88] sm:$0xff]
  %v37 = vld [vmem:[%s1 + $0x90] sm:$0xff]
  %v38 = vld [vmem:[%s1 + $0x98] sm:$0xff]
  %v39 = vld [vmem:[%s1 + $0xa0] sm:$0xff]
  %v40 = vld [vmem:[%s1 + $0xa8] sm:$0xff]
  %v41 = vld [vmem:[%s1 + $0xb0] sm:$0xff]
  %v42 = vld [vmem:[%s1 + $0xb8] sm:$0xff]
  %v43 = vld [vmem:[%s1 + $0xc0] sm:$0xff]
  %v44 = vld [vmem:[%s1 + $0xc8] sm:$0xff]
  %v45 = vld [vmem:[%s1 + $0xd0] sm:$0xff]
  %v46 = vld [vmem:[%s1 + $0xd8] sm:$0xff]
  %v47 = vld [vmem:[%s1 + $0xe0] sm:$0xff]
  %v48 = vld [vmem:[%s1 + $0xe8] sm:$0xff]
  %v49 = vld [vmem:[%s1 + $0xf0] sm:$0xff]
  %v50 = vld [vmem:[%s1 + $0xf8] sm:$0xff]
  %v51 = vld [vmem:[%s1 + $0x100] sm:$0xff]
  %v52 = vld [vmem:[%s1 + $0x108] sm:$0xff]
  %v53 = vld [vmem:[%s1 + $0x110] sm:$0xff]
  %v54 = vld [vmem:[%s1 + $0x118] sm:$0xff]
  %v55 = vld [vmem:[%s1 + $0x120] sm:$0xff]
  %v56 = vld [vmem:[%s1 + $0x128] sm:$0xff]
  %v57 = vld [vmem:[%s1 + $0x130] sm:$0xff]
  %v58 = vld [vmem:[%s1 + $0x138] sm:$0xff]
  %v59 = vld [vmem:[%s1 + $0x140] sm:$0xff]
  %v60 = vld [vmem:[%s1 + $0x148] sm:$0xff]
  %v65 = vunpack.c.l.b16 %v15
  %v66 = vunpack.c.h.b16 %v15
  %v67 = vunpack.c.l.b16 %v16
  %v68 = vunpack.c.h.b16 %v16
  %v69 = vunpack.c.l.b16 %v17
  %v70 = vunpack.c.h.b16 %v17
  %v71 = vunpack.c.l.b16 %v18
  %v72 = vunpack.c.h.b16 %v18
  %v73 = vpack.c.b16 %v67, %v65
  %v74 = vpack.c.b16 %v68, %v66
  %v75 = vpack.c.b16 %v71, %v69
  %v76 = vpack.c.b16 %v72, %v70
  %v121 = vunpack.c.l.b16 %v19
  %v122 = vunpack.c.h.b16 %v19
  %v123 = vunpack.c.l.b16 %v20
  %v124 = vunpack.c.h.b16 %v20
  %v125 = vunpack.c.l.b16 %v21
  %v126 = vunpack.c.h.b16 %v21
  %v127 = vunpack.c.l.b16 %v22
  %v128 = vunpack.c.h.b16 %v22
  %v129 = vunpack.c.l.b16 %v23
  %v130 = vunpack.c.h.b16 %v23
  %v131 = vunpack.c.l.b16 %v24
  %v132 = vunpack.c.h.b16 %v24
  %v133 = vunpack.c.l.b16 %v25
  %v134 = vunpack.c.h.b16 %v25
  %v135 = vunpack.c.l.b16 %v26
  %v136 = vunpack.c.h.b16 %v26
  %v137 = vunpack.c.l.b16 %v27
  %v138 = vunpack.c.h.b16 %v27
  %v139 = vunpack.c.l.b16 %v28
  %v140 = vunpack.c.h.b16 %v28
  %v141 = vunpack.c.l.b16 %v29
  %v142 = vunpack.c.h.b16 %v29
  %v143 = vunpack.c.l.b16 %v30
  %v144 = vunpack.c.h.b16 %v30
  %v145 = vunpack.c.l.b16 %v31
  %v146 = vunpack.c.h.b16 %v31
  %v147 = vunpack.c.l.b16 %v32
  %v148 = vunpack.c.h.b16 %v32
  %v149 = vunpack.c.l.b16 %v33
  %v150 = vunpack.c.h.b16 %v33
  %v151 = vunpack.c.l.b16 %v34
  %v152 = vunpack.c.h.b16 %v34
  %v153 = vunpack.c.l.b16 %v35
  %v154 = vunpack.c.h.b16 %v35
  %v155 = vunpack.c.l.b16 %v36
  %v156 = vunpack.c.h.b16 %v36
  %v157 = vunpack.c.l.b16 %v37
  %v158 = vunpack.c.h.b16 %v37
  %v159 = vunpack.c.l.b16 %v38
  %v160 = vunpack.c.h.b16 %v38
  %v161 = vunpack.c.l.b16 %v39
  %v162 = vunpack.c.h.b16 %v39
  %v163 = vunpack.c.l.b16 %v40
  %v164 = vunpack.c.h.b16 %v40
  %v165 = vunpack.c.l.b16 %v41
  %v166 = vunpack.c.h.b16 %v41
  %v167 = vunpack.c.l.b16 %v42
  %v168 = vunpack.c.h.b16 %v42
  %v169 = vunpack.c.l.b16 %v43
  %v170 = vunpack.c.h.b16 %v43
  %v171 = vunpack.c.l.b16 %v44
  %v172 = vunpack.c.h.b16 %v44
  %v173 = vunpack.c.l.b16 %v45
  %v174 = vunpack.c.h.b16 %v45
  %v175 = vunpack.c.l.b16 %v46
  %v176 = vunpack.c.h.b16 %v46
  %v177 = vunpack.c.l.b16 %v47
  %v178 = vunpack.c.h.b16 %v47
  %v179 = vunpack.c.l.b16 %v48
  %v180 = vunpack.c.h.b16 %v48
  %v181 = vunpack.c.l.b16 %v49
  %v182 = vunpack.c.h.b16 %v49
  %v183 = vunpack.c.l.b16 %v50
  %v184 = vunpack.c.h.b16 %v50
  %v185 = vunpack.c.l.b16 %v51
  %v186 = vunpack.c.h.b16 %v51
  %v187 = vunpack.c.l.b16 %v52
  %v188 = vunpack.c.h.b16 %v52
  %v189 = vunpack.c.l.b16 %v53
  %v190 = vunpack.c.h.b16 %v53
  %v191 = vunpack.c.l.b16 %v54
  %v192 = vunpack.c.h.b16 %v54
  %v193 = vunpack.c.l.b16 %v55
  %v194 = vunpack.c.h.b16 %v55
  %v195 = vunpack.c.l.b16 %v56
  %v196 = vunpack.c.h.b16 %v56
  %v197 = vunpack.c.l.b16 %v57
  %v198 = vunpack.c.h.b16 %v57
  %v199 = vunpack.c.l.b16 %v58
  %v200 = vunpack.c.h.b16 %v58
  %v201 = vunpack.c.l.b16 %v59
  %v202 = vunpack.c.h.b16 %v59
  %v203 = vunpack.c.l.b16 %v60
  %v204 = vunpack.c.h.b16 %v60
  %v205 = vpack.c.b16 %v125, %v121
  %v206 = vpack.c.b16 %v126, %v122
  %v207 = vpack.c.b16 %v127, %v123
  %v208 = vpack.c.b16 %v128, %v124
  %v209 = vpack.c.b16 %v133, %v129
  %v210 = vpack.c.b16 %v134, %v130
  %v211 = vpack.c.b16 %v135, %v131
  %v212 = vpack.c.b16 %v136, %v132
  %v213 = vpack.c.b16 %v141, %v137
  %v214 = vpack.c.b16 %v142, %v138
  %v215 = vpack.c.b16 %v143, %v139
  %v216 = vpack.c.b16 %v144, %v140
  %v217 = vpack.c.b16 %v149, %v145
  %v218 = vpack.c.b16 %v150, %v146
  %v219 = vpack.c.b16 %v151, %v147
  %v220 = vpack.c.b16 %v152, %v148
  %v221 = vpack.c.b16 %v157, %v153
  %v222 = vpack.c.b16 %v158, %v154
  %v223 = vpack.c.b16 %v159, %v155
  %v224 = vpack.c.b16 %v160, %v156
  %v225 = vpack.c.b16 %v165, %v161
  %v226 = vpack.c.b16 %v166, %v162
  %v227 = vpack.c.b16 %v167, %v163
  %v228 = vpack.c.b16 %v168, %v164
  %v229 = vpack.c.b16 %v173, %v169
  %v230 = vpack.c.b16 %v174, %v170
  %v231 = vpack.c.b16 %v175, %v171
  %v232 = vpack.c.b16 %v176, %v172
  %v233 = vpack.c.b16 %v181, %v177
  %v234 = vpack.c.b16 %v182, %v178
  %v235 = vpack.c.b16 %v183, %v179
  %v236 = vpack.c.b16 %v184, %v180
  %v237 = vpack.c.b16 %v189, %v185
  %v238 = vpack.c.b16 %v190, %v186
  %v239 = vpack.c.b16 %v191, %v187
  %v240 = vpack.c.b16 %v192, %v188
  %v241 = vpack.c.b16 %v197, %v193
  %v242 = vpack.c.b16 %v198, %v194
  %v243 = vpack.c.b16 %v199, %v195
  %v244 = vpack.c.b16 %v200, %v196
  %v245 = vpack.c.b16 %v201, %v201
  %v246 = vpack.c.b16 %v202, %v202
  %v247 = vpack.c.b16 %v203, %v203
  %v248 = vpack.c.b16 %v204, %v204
  %vm289 = vcmask 326656
  %v291 = vsel %vm289, %v74, 0
  %v294 = vsel %vm289, %v76, 0
  %vm296 = vcmask 1043456
  %v298 = vsel %vm296, %v245, 0
  %v301 = vsel %vm296, %v246, 0
  %v304 = vsel %vm296, %v247, 0
  %v307 = vsel %vm296, %v248, 0
  %309 = vmatprep.subr.bf16.mxu0 %v206
  %310 = vmatpush1.bf16.msra.mxu0 %v205
  %311 = vmatprep.subr.bf16.mxu0 %v210
  %312 = vmatpush1.bf16.msra.mxu0 %v209
  %313 = vmatprep.subr.bf16.mxu0 %v214
  %314 = vmatpush1.bf16.msra.mxu0 %v213
  %315 = vmatprep.subr.bf16.mxu0 %v218
  %316 = vmatpush1.bf16.msra.mxu0 %v217
  %317 = vmatprep.subr.bf16.mxu0 %v222
  %318 = vmatpush1.bf16.msra.mxu0 %v221
  %319 = vmatprep.subr.bf16.mxu0 %v226
  %320 = vmatpush1.bf16.msra.mxu0 %v225
  %321 = vmatprep.subr.bf16.mxu0 %v230
  %322 = vmatpush1.bf16.msra.mxu0 %v229
  %323 = vmatprep.subr.bf16.mxu0 %v234
  %324 = vmatpush1.bf16.msra.mxu0 %v233
  %325 = vmatprep.subr.bf16.mxu0 %v238
  %326 = vmatpush1.bf16.msra.mxu0 %v237
  %327 = vmatprep.subr.bf16.mxu0 %v242
  %328 = vmatpush1.bf16.msra.mxu0 %v241
  %329 = vmatprep.subr.bf16.mxu0 %v301
  %330 = vmatpush1.bf16.msra.mxu0 %v298
  %331 = vmatprep.subr.bf16.mxu0 0
  %332 = vmatpush1.bf16.msra.mxu0 0
  %333 = vmatprep.subr.bf16.mxu0 0
  %334 = vmatpush1.bf16.msra.mxu0 0
  %335 = vmatprep.subr.bf16.mxu0 0
  %336 = vmatpush1.bf16.msra.mxu0 0
  %337 = vmatprep.subr.bf16.mxu0 0
  %338 = vmatpush1.bf16.msra.mxu0 0
  %339 = vmatprep.subr.bf16.mxu0 0
  %340 = vmatpush1.bf16.msra.mxu0 0
  %341 = vmatprep.mubr.bf16.mxu0 %v291
  %342 = vmatmul.mubr.bf16.gmra.mrb[0].mxu0 %v73
  %v343 = vpop.f32.mrb[0].mxu0
  %v344 = vadd.f32 0.0, %v343
  %v345 = vpop.f32.mrb[0].mxu0
  %v346 = vadd.f32 0.0, %v345
  %v347 = vpop.f32.mrb[0].mxu0
  %v348 = vadd.f32 0.0, %v347
  %v349 = vpop.f32.mrb[0].mxu0
  %v350 = vadd.f32 0.0, %v349
  %351 = vmatprep.mubr.bf16.mxu0 %v294
  %352 = vmatmul.mubr.bf16.gmra.mrb[0].mxu0 %v75
  %v353 = vpop.f32.mrb[0].mxu0
  %v354 = vadd.f32 0.0, %v353
  %v355 = vpop.f32.mrb[0].mxu0
  %v356 = vadd.f32 0.0, %v355
  %v357 = vpop.f32.mrb[0].mxu0
  %v358 = vadd.f32 0.0, %v357
  %v359 = vpop.f32.mrb[0].mxu0
  %v360 = vadd.f32 0.0, %v359
  %361 = vdwg.mxu0
  %362 = vmatprep.subr.bf16.mxu0 %v208
  %363 = vmatpush1.bf16.msra.mxu0 %v207
  %364 = vmatprep.subr.bf16.mxu0 %v212
  %365 = vmatpush1.bf16.msra.mxu0 %v211
  %366 = vmatprep.subr.bf16.mxu0 %v216
  %367 = vmatpush1.bf16.msra.mxu0 %v215
  %368 = vmatprep.subr.bf16.mxu0 %v220
  %369 = vmatpush1.bf16.msra.mxu0 %v219
  %370 = vmatprep.subr.bf16.mxu0 %v224
  %371 = vmatpush1.bf16.msra.mxu0 %v223
  %372 = vmatprep.subr.bf16.mxu0 %v228
  %373 = vmatpush1.bf16.msra.mxu0 %v227
  %374 = vmatprep.subr.bf16.mxu0 %v232
  %375 = vmatpush1.bf16.msra.mxu0 %v231
  %376 = vmatprep.subr.bf16.mxu0 %v236
  %377 = vmatpush1.bf16.msra.mxu0 %v235
  %378 = vmatprep.subr.bf16.mxu0 %v240
  %379 = vmatpush1.bf16.msra.mxu0 %v239
  %380 = vmatprep.subr.bf16.mxu0 %v244
  %381 = vmatpush1.bf16.msra.mxu0 %v243
  %382 = vmatprep.subr.bf16.mxu0 %v307
  %383 = vmatpush1.bf16.msra.mxu0 %v304
  %384 = vmatprep.subr.bf16.mxu0 0
  %385 = vmatpush1.bf16.msra.mxu0 0
  %386 = vmatprep.subr.bf16.mxu0 0
  %387 = vmatpush1.bf16.msra.mxu0 0
  %388 = vmatprep.subr.bf16.mxu0 0
  %389 = vmatpush1.bf16.msra.mxu0 0
  %390 = vmatprep.subr.bf16.mxu0 0
  %391 = vmatpush1.bf16.msra.mxu0 0
  %392 = vmatprep.subr.bf16.mxu0 0
  %393 = vmatpush1.bf16.msra.mxu0 0
  %394 = vmatprep.mubr.bf16.mxu0 %v291
  %395 = vmatmul.mubr.bf16.gmra.mrb[0].mxu0 %v73
  %v396 = vpop.f32.mrb[0].mxu0
  %v397 = vadd.f32 0.0, %v396
  %v398 = vpop.f32.mrb[0].mxu0
  %v399 = vadd.f32 0.0, %v398
  %v400 = vpop.f32.mrb[0].mxu0
  %v401 = vadd.f32 0.0, %v400
  %v402 = vpop.f32.mrb[0].mxu0
  %v403 = vadd.f32 0.0, %v402
  %404 = vmatprep.mubr.bf16.mxu0 %v294
  %405 = vmatmul.mubr.bf16.gmra.mrb[0].mxu0 %v75
  %v406 = vpop.f32.mrb[0].mxu0
  %v407 = vadd.f32 0.0, %v406
  %v408 = vpop.f32.mrb[0].mxu0
  %v409 = vadd.f32 0.0, %v408
  %v410 = vpop.f32.mrb[0].mxu0
  %v411 = vadd.f32 0.0, %v410
  %v412 = vpop.f32.mrb[0].mxu0
  %v413 = vadd.f32 0.0, %v412
  %414 = vdwg.mxu0
  %v415 = vmax.f32 %v344, %v397
  %v416 = vmax.f32 %v346, %v399
  %v417 = vmax.f32 %v348, %v401
  %v418 = vmax.f32 %v350, %v403
  %v419 = vmax.f32 %v354, %v407
  %v420 = vmax.f32 %v356, %v409
  %v421 = vmax.f32 %v358, %v411
  %v422 = vmax.f32 %v360, %v413
  %v423 = vmax.f32 %v415, %v416
  %v424 = vmax.f32 %v417, %v418
  %v425 = vmax.f32 %v419, %v420
  %v426 = vmax.f32 %v421, %v422
  %v427 = vld [vmem:[%s2] sm:$0x1]
  %v429 = vlaneseq
  %v430 = vshrl.u32 %v429, 7
  %v431 = vsub.s32 0, %v430
  %v432 = vrot.slane %v427, %v431
  %v434 = vadd.f32 %v423, %v432
  %v435 = vadd.f32 %v424, %v432
  %v436 = vadd.f32 %v425, %v432
  %v437 = vadd.f32 %v426, %v432
  %v438 = vmul.f32 %v434, 0.01
  %v439 = vmul.f32 %v435, 0.01
  %v440 = vmul.f32 %v436, 0.01
  %v441 = vmul.f32 %v437, 0.01
  %v442 = vmax.f32 %v434, %v438
  %v443 = vmax.f32 %v435, %v439
  %v444 = vmax.f32 %v436, %v440
  %v445 = vmax.f32 %v437, %v441
  %v446 = vpack.c.bf16 %v443, %v442
  %v447 = vpack.c.bf16 %v445, %v444
  %v450 = vunpack.c.l.b16 %v446
  %v451 = vunpack.c.h.b16 %v446
  %v452 = vunpack.c.l.b16 %v447
  %v453 = vunpack.c.h.b16 %v447
  %v454 = vpack.c.b16 %v450, %v450
  %v455 = vpack.c.b16 %v451, %v451
  %v456 = vpack.c.b16 %v452, %v452
  %v457 = vpack.c.b16 %v453, %v453
  %462 = vst [vmem:[%s3] sm:$0xf] %v454
  %463 = vst [vmem:[%s3 + $0x4] sm:$0xf] %v455
  %464 = vst [vmem:[%s3 + $0x8] sm:$0xf] %v456
  %465 = vst [vmem:[%s3 + $0xc] sm:$0xf] %v457
  // Predicated region
  $region14: #{lenet_forward.3} parent=0 // pred_check
    _
  $region15: #{lenet_forward.3} parent=0 // pred_check_branch
    %467 = sbr.rel (0) target = $region17
  $region16: #{lenet_forward.3} parent=0 // pred_region
    _
  $region17: #{lenet_forward.3} parent=0 // pred_fallthru
    _
  // Predicated region
  $region18: #{lenet_forward.3} parent=0 // pred_check
    _
  $region19: #{lenet_forward.3} parent=0 // pred_check_branch
    %469 = sbr.rel (0) target = $region21
  $region20: #{lenet_forward.3} parent=0 // pred_region
    _
  $region21: #{lenet_forward.3} parent=0 // pred_fallthru
    _

// kernel: lenet_forward.5
$region0: #{lenet_forward.5}
  #allocation0 [shape = 'u32[]', space=smem, size = 0x4, offset = 0x4, fixed_abs, tag = 'smem constant byte address 0x4 - core index']
  #allocation1 [shape = 'u32[144,128]{1,0:T(1,128)}', space=vmem, size = 0x12000, scoped, tag = 'internal scratch']
  %s0 = inlined_call_operand.vmem [shape: bf16[16,512], index: 0, kind: input, shape index: {}]
  %s1 = inlined_call_operand.vmem [shape: bf16[512,128], index: 1, kind: input, shape index: {}]
  %s2 = inlined_call_operand.vmem [shape: f32[1,128], index: 2, kind: input, shape index: {}]
  %s3 = inlined_call_operand.vmem [shape: bf16[128,128], index: 3, kind: input, shape index: {}]
  %s4 = inlined_call_operand.vmem [shape: f32[1,128], index: 4, kind: input, shape index: {}]
  %s5 = inlined_call_operand.vmem [shape: bf16[128,128], index: 5, kind: input, shape index: {}]
  %s6 = inlined_call_operand.vmem [shape: f32[1,128], index: 6, kind: input, shape index: {}]
  %s7 = inlined_call_operand.vmem [shape: f32[16,128], index: 7, kind: output, shape index: {}]
  %s8 = sld [smem:[#allocation0]]
  $region38: #{lenet_forward.5} parent=0
    _
  %s10 = ssub.s32 1, %s8
  %s11 = scalar_select 0, %s10, %s8
  // Predicated region
  $region2: #{lenet_forward.5} parent=0 // pred_check
    _
  $region3: #{lenet_forward.5} parent=0 // pred_check_branch
    %13 = sbr.rel (0) target = $region5
  $region4: #{lenet_forward.5} parent=0 // pred_region
    _
  $region5: #{lenet_forward.5} parent=0 // pred_fallthru
    _
  // Predicated region
  $region6: #{lenet_forward.5} parent=0 // pred_check
    _
  $region7: #{lenet_forward.5} parent=0 // pred_check_branch
    %15 = sbr.rel (0) target = $region9
  $region8: #{lenet_forward.5} parent=0 // pred_region
    _
  $region9: #{lenet_forward.5} parent=0 // pred_fallthru
    _
  // Predicated region
  $region10: #{lenet_forward.5} parent=0 // pred_check
    _
  $region11: #{lenet_forward.5} parent=0 // pred_check_branch
    %17 = sbr.rel (0) target = $region13
  $region12: #{lenet_forward.5} parent=0 // pred_region
    _
  $region13: #{lenet_forward.5} parent=0 // pred_fallthru
    _
  // Predicated region
  $region14: #{lenet_forward.5} parent=0 // pred_check
    _
  $region15: #{lenet_forward.5} parent=0 // pred_check_branch
    %19 = sbr.rel (0) target = $region17
  $region16: #{lenet_forward.5} parent=0 // pred_region
    _
  $region17: #{lenet_forward.5} parent=0 // pred_fallthru
    _
  // Predicated region
  $region18: #{lenet_forward.5} parent=0 // pred_check
    _
  $region19: #{lenet_forward.5} parent=0 // pred_check_branch
    %21 = sbr.rel (0) target = $region21
  $region20: #{lenet_forward.5} parent=0 // pred_region
    _
  $region21: #{lenet_forward.5} parent=0 // pred_fallthru
    _
  // Predicated region
  $region22: #{lenet_forward.5} parent=0 // pred_check
    _
  $region23: #{lenet_forward.5} parent=0 // pred_check_branch
    %23 = sbr.rel (0) target = $region25
  $region24: #{lenet_forward.5} parent=0 // pred_region
    _
  $region25: #{lenet_forward.5} parent=0 // pred_fallthru
    _
  // Predicated region
  $region26: #{lenet_forward.5} parent=0 // pred_check
    _
  $region27: #{lenet_forward.5} parent=0 // pred_check_branch
    %25 = sbr.rel (0) target = $region29
  $region28: #{lenet_forward.5} parent=0 // pred_region
    _
  $region29: #{lenet_forward.5} parent=0 // pred_fallthru
    _
  %v27 = vld [vmem:[%s0] sm:$0xff]
  %v28 = vld [vmem:[%s0 + $0x8] sm:$0xff]
  %v29 = vld [vmem:[%s0 + $0x10] sm:$0xff]
  %v30 = vld [vmem:[%s0 + $0x18] sm:$0xff]
  %v31 = vld [vmem:[%s1] sm:$0xf]
  %v32 = vld [vmem:[%s1 + $0x4] sm:$0xf]
  %v33 = vld [vmem:[%s1 + $0x8] sm:$0xf]
  %v34 = vld [vmem:[%s1 + $0xc] sm:$0xf]
  %v35 = vld [vmem:[%s1 + $0x10] sm:$0xf]
  %v36 = vld [vmem:[%s1 + $0x14] sm:$0xf]
  %v37 = vld [vmem:[%s1 + $0x18] sm:$0xf]
  %v38 = vld [vmem:[%s1 + $0x1c] sm:$0xf]
  %v39 = vld [vmem:[%s1 + $0x20] sm:$0xf]
  %v40 = vld [vmem:[%s1 + $0x24] sm:$0xf]
  %v41 = vld [vmem:[%s1 + $0x28] sm:$0xf]
  %v42 = vld [vmem:[%s1 + $0x2c] sm:$0xf]
  %v43 = vld [vmem:[%s1 + $0x30] sm:$0xf]
  %v44 = vld [vmem:[%s1 + $0x34] sm:$0xf]
  %v45 = vld [vmem:[%s1 + $0x38] sm:$0xf]
  %v46 = vld [vmem:[%s1 + $0x3c] sm:$0xf]
  %v47 = vld [vmem:[%s1 + $0x40] sm:$0xf]
  %v48 = vld [vmem:[%s1 + $0x44] sm:$0xf]
  %v49 = vld [vmem:[%s1 + $0x48] sm:$0xf]
  %v50 = vld [vmem:[%s1 + $0x4c] sm:$0xf]
  %v51 = vld [vmem:[%s1 + $0x50] sm:$0xf]
  %v52 = vld [vmem:[%s1 + $0x54] sm:$0xf]
  %v53 = vld [vmem:[%s1 + $0x58] sm:$0xf]
  %v54 = vld [vmem:[%s1 + $0x5c] sm:$0xf]
  %v55 = vld [vmem:[%s1 + $0x60] sm:$0xf]
  %v56 = vld [vmem:[%s1 + $0x64] sm:$0xf]
  %v57 = vld [vmem:[%s1 + $0x68] sm:$0xf]
  %v58 = vld [vmem:[%s1 + $0x6c] sm:$0xf]
  %v59 = vld [vmem:[%s1 + $0x70] sm:$0xf]
  %v60 = vld [vmem:[%s1 + $0x74] sm:$0xf]
  %v61 = vld [vmem:[%s1 + $0x78] sm:$0xf]
  %v62 = vld [vmem:[%s1 + $0x7c] sm:$0xf]
  %v63 = vld [vmem:[%s1 + $0x80] sm:$0xf]
  %v64 = vld [vmem:[%s1 + $0x84] sm:$0xf]
  %v65 = vld [vmem:[%s1 + $0x88] sm:$0xf]
  %v66 = vld [vmem:[%s1 + $0x8c] sm:$0xf]
  %v67 = vld [vmem:[%s1 + $0x90] sm:$0xf]
  %v68 = vld [vmem:[%s1 + $0x94] sm:$0xf]
  %v69 = vld [vmem:[%s1 + $0x98] sm:$0xf]
  %v70 = vld [vmem:[%s1 + $0x9c] sm:$0xf]
  %v71 = vld [vmem:[%s1 + $0xa0] sm:$0xf]
  %v72 = vld [vmem:[%s1 + $0xa4] sm:$0xf]
  %v73 = vld [vmem:[%s1 + $0xa8] sm:$0xf]
  %v74 = vld [vmem:[%s1 + $0xac] sm:$0xf]
  %v75 = vld [vmem:[%s1 + $0xb0] sm:$0xf]
  %v76 = vld [vmem:[%s1 + $0xb4] sm:$0xf]
  %v77 = vld [vmem:[%s1 + $0xb8] sm:$0xf]
  %v78 = vld [vmem:[%s1 + $0xbc] sm:$0xf]
  %v79 = vld [vmem:[%s1 + $0xc0] sm:$0xf]
  %v80 = vld [vmem:[%s1 + $0xc4] sm:$0xf]
  %v81 = vld [vmem:[%s1 + $0xc8] sm:$0xf]
  %v82 = vld [vmem:[%s1 + $0xcc] sm:$0xf]
  %v83 = vld [vmem:[%s1 + $0xd0] sm:$0xf]
  %v84 = vld [vmem:[%s1 + $0xd4] sm:$0xf]
  %v85 = vld [vmem:[%s1 + $0xd8] sm:$0xf]
  %v86 = vld [vmem:[%s1 + $0xdc] sm:$0xf]
  %v87 = vld [vmem:[%s1 + $0xe0] sm:$0xf]
  %v88 = vld [vmem:[%s1 + $0xe4] sm:$0xf]
  %v89 = vld [vmem:[%s1 + $0xe8] sm:$0xf]
  %v90 = vld [vmem:[%s1 + $0xec] sm:$0xf]
  %v91 = vld [vmem:[%s1 + $0xf0] sm:$0xf]
  %v92 = vld [vmem:[%s1 + $0xf4] sm:$0xf]
  %v93 = vld [vmem:[%s1 + $0xf8] sm:$0xf]
  %v94 = vld [vmem:[%s1 + $0xfc] sm:$0xf]
  %v95 = vld [vmem:[%s2] sm:$0x1]
  %v97 = vlaneseq
  %v98 = vshrl.u32 %v97, 7
  %v99 = vsub.s32 0, %v98
  %v100 = vrot.slane %v95, %v99
  %v106 = vunpack.c.l.b16 %v27
  %v107 = vunpack.c.h.b16 %v27
  %v108 = vunpack.c.l.b16 %v28
  %v109 = vunpack.c.h.b16 %v28
  %v110 = vunpack.c.l.b16 %v29
  %v111 = vunpack.c.h.b16 %v29
  %v112 = vunpack.c.l.b16 %v30
  %v113 = vunpack.c.h.b16 %v30
  %v114 = vpack.c.b16 %v110, %v106
  %v115 = vpack.c.b16 %v111, %v107
  %v116 = vpack.c.b16 %v112, %v108
  %v117 = vpack.c.b16 %v113, %v109
  %v186 = vunpack.c.l.b16 %v31
  %v187 = vunpack.c.l.b16 %v32
  %v188 = vunpack.c.l.b16 %v33
  %v189 = vunpack.c.l.b16 %v34
  %v190 = vunpack.c.l.b16 %v35
  %v191 = vunpack.c.l.b16 %v36
  %v192 = vunpack.c.l.b16 %v37
  %v193 = vunpack.c.l.b16 %v38
  %v194 = vunpack.c.l.b16 %v39
  %v195 = vunpack.c.l.b16 %v40
  %v196 = vunpack.c.l.b16 %v41
  %v197 = vunpack.c.l.b16 %v42
  %v198 = vunpack.c.l.b16 %v43
  %v199 = vunpack.c.l.b16 %v44
  %v200 = vunpack.c.l.b16 %v45
  %v201 = vunpack.c.l.b16 %v46
  %v202 = vunpack.c.l.b16 %v47
  %v203 = vunpack.c.l.b16 %v48
  %v204 = vunpack.c.l.b16 %v49
  %v205 = vunpack.c.l.b16 %v50
  %v206 = vunpack.c.l.b16 %v51
  %v207 = vunpack.c.l.b16 %v52
  %v208 = vunpack.c.l.b16 %v53
  %v209 = vunpack.c.l.b16 %v54
  %v210 = vunpack.c.l.b16 %v55
  %v211 = vunpack.c.l.b16 %v56
  %v212 = vunpack.c.l.b16 %v57
  %v213 = vunpack.c.l.b16 %v58
  %v214 = vunpack.c.l.b16 %v59
  %v215 = vunpack.c.l.b16 %v60
  %v216 = vunpack.c.l.b16 %v61
  %v217 = vunpack.c.l.b16 %v62
  %v218 = vunpack.c.l.b16 %v63
  %v219 = vunpack.c.l.b16 %v64
  %v220 = vunpack.c.l.b16 %v65
  %v221 = vunpack.c.l.b16 %v66
  %v222 = vunpack.c.l.b16 %v67
  %v223 = vunpack.c.l.b16 %v68
  %v224 = vunpack.c.l.b16 %v69
  %v225 = vunpack.c.l.b16 %v70
  %v226 = vunpack.c.l.b16 %v71
  %v227 = vunpack.c.l.b16 %v72
  %v228 = vunpack.c.l.b16 %v73
  %v229 = vunpack.c.l.b16 %v74
  %v230 = vunpack.c.l.b16 %v75
  %v231 = vunpack.c.l.b16 %v76
  %v232 = vunpack.c.l.b16 %v77
  %v233 = vunpack.c.l.b16 %v78
  %v234 = vunpack.c.l.b16 %v79
  %v235 = vunpack.c.l.b16 %v80
  %v236 = vunpack.c.l.b16 %v81
  %v237 = vunpack.c.l.b16 %v82
  %v238 = vunpack.c.l.b16 %v83
  %v239 = vunpack.c.l.b16 %v84
  %v240 = vunpack.c.l.b16 %v85
  %v241 = vunpack.c.l.b16 %v86
  %v242 = vunpack.c.l.b16 %v87
  %v243 = vunpack.c.l.b16 %v88
  %v244 = vunpack.c.l.b16 %v89
  %v245 = vunpack.c.l.b16 %v90
  %v246 = vunpack.c.l.b16 %v91
  %v247 = vunpack.c.l.b16 %v92
  %v248 = vunpack.c.l.b16 %v93
  %v249 = vunpack.c.l.b16 %v94
  %v250 = vpack.c.b16 %v187, %v186
  %v251 = vpack.c.b16 %v189, %v188
  %v252 = vpack.c.b16 %v191, %v190
  %v253 = vpack.c.b16 %v193, %v192
  %v254 = vpack.c.b16 %v195, %v194
  %v255 = vpack.c.b16 %v197, %v196
  %v256 = vpack.c.b16 %v199, %v198
  %v257 = vpack.c.b16 %v201, %v200
  %v258 = vpack.c.b16 %v203, %v202
  %v259 = vpack.c.b16 %v205, %v204
  %v260 = vpack.c.b16 %v207, %v206
  %v261 = vpack.c.b16 %v209, %v208
  %v262 = vpack.c.b16 %v211, %v210
  %v263 = vpack.c.b16 %v213, %v212
  %v264 = vpack.c.b16 %v215, %v214
  %v265 = vpack.c.b16 %v217, %v216
  %v266 = vpack.c.b16 %v219, %v218
  %v267 = vpack.c.b16 %v221, %v220
  %v268 = vpack.c.b16 %v223, %v222
  %v269 = vpack.c.b16 %v225, %v224
  %v270 = vpack.c.b16 %v227, %v226
  %v271 = vpack.c.b16 %v229, %v228
  %v272 = vpack.c.b16 %v231, %v230
  %v273 = vpack.c.b16 %v233, %v232
  %v274 = vpack.c.b16 %v235, %v234
  %v275 = vpack.c.b16 %v237, %v236
  %v276 = vpack.c.b16 %v239, %v238
  %v277 = vpack.c.b16 %v241, %v240
  %v278 = vpack.c.b16 %v243, %v242
  %v279 = vpack.c.b16 %v245, %v244
  %v280 = vpack.c.b16 %v247, %v246
  %v281 = vpack.c.b16 %v249, %v248
  %314 = vmatprep.subr.bf16.mxu0 0
  %315 = vmatpush1.bf16.msra.mxu0 %v250
  %316 = vmatprep.subr.bf16.mxu0 0
  %317 = vmatpush1.bf16.msra.mxu0 %v251
  %318 = vmatprep.subr.bf16.mxu0 0
  %319 = vmatpush1.bf16.msra.mxu0 %v252
  %320 = vmatprep.subr.bf16.mxu0 0
  %321 = vmatpush1.bf16.msra.mxu0 %v253
  %322 = vmatprep.subr.bf16.mxu0 0
  %323 = vmatpush1.bf16.msra.mxu0 %v254
  %324 = vmatprep.subr.bf16.mxu0 0
  %325 = vmatpush1.bf16.msra.mxu0 %v255
  %326 = vmatprep.subr.bf16.mxu0 0
  %327 = vmatpush1.bf16.msra.mxu0 %v256
  %328 = vmatprep.subr.bf16.mxu0 0
  %329 = vmatpush1.bf16.msra.mxu0 %v257
  %330 = vmatprep.subr.bf16.mxu0 0
  %331 = vmatpush1.bf16.msra.mxu0 %v258
  %332 = vmatprep.subr.bf16.mxu0 0
  %333 = vmatpush1.bf16.msra.mxu0 %v259
  %334 = vmatprep.subr.bf16.mxu0 0
  %335 = vmatpush1.bf16.msra.mxu0 %v260
  %336 = vmatprep.subr.bf16.mxu0 0
  %337 = vmatpush1.bf16.msra.mxu0 %v261
  %338 = vmatprep.subr.bf16.mxu0 0
  %339 = vmatpush1.bf16.msra.mxu0 %v262
  %340 = vmatprep.subr.bf16.mxu0 0
  %341 = vmatpush1.bf16.msra.mxu0 %v263
  %342 = vmatprep.subr.bf16.mxu0 0
  %343 = vmatpush1.bf16.msra.mxu0 %v264
  %344 = vmatprep.subr.bf16.mxu0 0
  %345 = vmatpush1.bf16.msra.mxu0 %v265
  %346 = vmatprep.mubr.bf16.mxu0 %v115
  %347 = vmatmul.mubr.bf16.gmra.mrb[0].mxu0 %v114
  %v348 = vpop.f32.mrb[0].mxu0
  %v349 = vadd.f32 %v100, %v348
  %v350 = vpop.f32.mrb[0].mxu0
  %v351 = vpop.f32.mrb[0].mxu0
  %v352 = vadd.f32 %v100, %v351
  %v353 = vpop.f32.mrb[0].mxu0
  %354 = vdwg.mxu0
  %355 = vmatprep.subr.bf16.mxu0 0
  %356 = vmatpush1.bf16.msra.mxu0 %v266
  %357 = vmatprep.subr.bf16.mxu0 0
  %358 = vmatpush1.bf16.msra.mxu0 %v267
  %359 = vmatprep.subr.bf16.mxu0 0
  %360 = vmatpush1.bf16.msra.mxu0 %v268
  %361 = vmatprep.subr.bf16.mxu0 0
  %362 = vmatpush1.bf16.msra.mxu0 %v269
  %363 = vmatprep.subr.bf16.mxu0 0
  %364 = vmatpush1.bf16.msra.mxu0 %v270
  %365 = vmatprep.subr.bf16.mxu0 0
  %366 = vmatpush1.bf16.msra.mxu0 %v271
  %367 = vmatprep.subr.bf16.mxu0 0
  %368 = vmatpush1.bf16.msra.mxu0 %v272
  %369 = vmatprep.subr.bf16.mxu0 0
  %370 = vmatpush1.bf16.msra.mxu0 %v273
  %371 = vmatprep.subr.bf16.mxu0 0
  %372 = vmatpush1.bf16.msra.mxu0 %v274
  %373 = vmatprep.subr.bf16.mxu0 0
  %374 = vmatpush1.bf16.msra.mxu0 %v275
  %375 = vmatprep.subr.bf16.mxu0 0
  %376 = vmatpush1.bf16.msra.mxu0 %v276
  %377 = vmatprep.subr.bf16.mxu0 0
  %378 = vmatpush1.bf16.msra.mxu0 %v277
  %379 = vmatprep.subr.bf16.mxu0 0
  %380 = vmatpush1.bf16.msra.mxu0 %v278
  %381 = vmatprep.subr.bf16.mxu0 0
  %382 = vmatpush1.bf16.msra.mxu0 %v279
  %383 = vmatprep.subr.bf16.mxu0 0
  %384 = vmatpush1.bf16.msra.mxu0 %v280
  %385 = vmatprep.subr.bf16.mxu0 0
  %386 = vmatpush1.bf16.msra.mxu0 %v281
  %387 = vmatprep.mubr.bf16.mxu0 %v117
  %388 = vmatmul.mubr.bf16.gmra.mrb[0].mxu0 %v116
  %v389 = vpop.f32.mrb[0].mxu0
  %v390 = vadd.f32 %v349, %v389
  %v391 = vpop.f32.mrb[0].mxu0
  %v392 = vpop.f32.mrb[0].mxu0
  %v393 = vadd.f32 %v352, %v392
  %v394 = vpop.f32.mrb[0].mxu0
  %395 = vdwg.mxu0
  %v396 = vmul.f32 %v390, 0.01
  %v397 = vmul.f32 %v393, 0.01
  %v398 = vmax.f32 %v390, %v396
  %v399 = vmax.f32 %v393, %v397
  %v400 = vpack.c.bf16 %v399, %v398
  %v401 = vld [vmem:[%s3] sm:$0xf]
  %v402 = vld [vmem:[%s3 + $0x4] sm:$0xf]
  %v403 = vld [vmem:[%s3 + $0x8] sm:$0xf]
  %v404 = vld [vmem:[%s3 + $0xc] sm:$0xf]
  %v405 = vld [vmem:[%s3 + $0x10] sm:$0xf]
  %v406 = vld [vmem:[%s3 + $0x14] sm:$0xf]
  %v407 = vld [vmem:[%s3 + $0x18] sm:$0xf]
  %v408 = vld [vmem:[%s3 + $0x1c] sm:$0xf]
  %v409 = vld [vmem:[%s3 + $0x20] sm:$0xf]
  %v410 = vld [vmem:[%s3 + $0x24] sm:$0xf]
  %v411 = vld [vmem:[%s3 + $0x28] sm:$0xf]
  %v412 = vld [vmem:[%s3 + $0x2c] sm:$0xf]
  %v413 = vld [vmem:[%s3 + $0x30] sm:$0xf]
  %v414 = vld [vmem:[%s3 + $0x34] sm:$0xf]
  %v415 = vld [vmem:[%s3 + $0x38] sm:$0xf]
  %v416 = vld [vmem:[%s3 + $0x3c] sm:$0xf]
  %v417 = vld [vmem:[%s4] sm:$0x1]
  %v419 = vlaneseq
  %v420 = vshrl.u32 %v419, 7
  %v421 = vsub.s32 0, %v420
  %v422 = vrot.slane %v417, %v421
  %v440 = vunpack.c.l.b16 %v401
  %v441 = vunpack.c.l.b16 %v402
  %v442 = vunpack.c.l.b16 %v403
  %v443 = vunpack.c.l.b16 %v404
  %v444 = vunpack.c.l.b16 %v405
  %v445 = vunpack.c.l.b16 %v406
  %v446 = vunpack.c.l.b16 %v407
  %v447 = vunpack.c.l.b16 %v408
  %v448 = vunpack.c.l.b16 %v409
  %v449 = vunpack.c.l.b16 %v410
  %v450 = vunpack.c.l.b16 %v411
  %v451 = vunpack.c.l.b16 %v412
  %v452 = vunpack.c.l.b16 %v413
  %v453 = vunpack.c.l.b16 %v414
  %v454 = vunpack.c.l.b16 %v415
  %v455 = vunpack.c.l.b16 %v416
  %v456 = vpack.c.b16 %v441, %v440
  %v457 = vpack.c.b16 %v443, %v442
  %v458 = vpack.c.b16 %v445, %v444
  %v459 = vpack.c.b16 %v447, %v446
  %v460 = vpack.c.b16 %v449, %v448
  %v461 = vpack.c.b16 %v451, %v450
  %v462 = vpack.c.b16 %v453, %v452
  %v463 = vpack.c.b16 %v455, %v454
  %472 = vmatprep.subr.bf16.mxu0 0
  %473 = vmatpush1.bf16.msra.mxu0 %v456
  %474 = vmatprep.subr.bf16.mxu0 0
  %475 = vmatpush1.bf16.msra.mxu0 %v457
  %476 = vmatprep.subr.bf16.mxu0 0
  %477 = vmatpush1.bf16.msra.mxu0 %v458
  %478 = vmatprep.subr.bf16.mxu0 0
  %479 = vmatpush1.bf16.msra.mxu0 %v459
  %480 = vmatprep.subr.bf16.mxu0 0
  %481 = vmatpush1.bf16.msra.mxu0 %v460
  %482 = vmatprep.subr.bf16.mxu0 0
  %483 = vmatpush1.bf16.msra.mxu0 %v461
  %484 = vmatprep.subr.bf16.mxu0 0
  %485 = vmatpush1.bf16.msra.mxu0 %v462
  %486 = vmatprep.subr.bf16.mxu0 0
  %487 = vmatpush1.bf16.msra.mxu0 %v463
  %488 = vmatprep.subr.bf16.mxu0 0
  %489 = vmatpush1.bf16.msra.mxu0 0
  %490 = vmatprep.subr.bf16.mxu0 0
  %491 = vmatpush1.bf16.msra.mxu0 0
  %492 = vmatprep.subr.bf16.mxu0 0
  %493 = vmatpush1.bf16.msra.mxu0 0
  %494 = vmatprep.subr.bf16.mxu0 0
  %495 = vmatpush1.bf16.msra.mxu0 0
  %496 = vmatprep.subr.bf16.mxu0 0
  %497 = vmatpush1.bf16.msra.mxu0 0
  %498 = vmatprep.subr.bf16.mxu0 0
  %499 = vmatpush1.bf16.msra.mxu0 0
  %500 = vmatprep.subr.bf16.mxu0 0
  %501 = vmatpush1.bf16.msra.mxu0 0
  %502 = vmatprep.subr.bf16.mxu0 0
  %503 = vmatpush1.bf16.msra.mxu0 0
  %504 = vmatprep.mubr.bf16.mxu0 0
  %505 = vmatmul.mubr.bf16.gmra.mrb[0].mxu0 %v400
  %v506 = vpop.f32.mrb[0].mxu0
  %v507 = vadd.f32 %v422, %v506
  %v508 = vpop.f32.mrb[0].mxu0
  %v509 = vpop.f32.mrb[0].mxu0
  %v510 = vadd.f32 %v422, %v509
  %v511 = vpop.f32.mrb[0].mxu0
  %512 = vdwg.mxu0
  %v513 = vmul.f32 %v507, 0.01
  %v514 = vmul.f32 %v510, 0.01
  %v515 = vmax.f32 %v507, %v513
  %v516 = vmax.f32 %v510, %v514
  %v517 = vpack.c.bf16 %v516, %v515
  %v518 = vld [vmem:[%s5] sm:$0xf]
  %v519 = vld [vmem:[%s5 + $0x4] sm:$0xf]
  %v520 = vld [vmem:[%s5 + $0x8] sm:$0xf]
  %v521 = vld [vmem:[%s5 + $0xc] sm:$0xf]
  %v522 = vld [vmem:[%s5 + $0x10] sm:$0xf]
  %v523 = vld [vmem:[%s5 + $0x14] sm:$0xf]
  %v524 = vld [vmem:[%s5 + $0x18] sm:$0xf]
  %v525 = vld [vmem:[%s5 + $0x1c] sm:$0xf]
  %v526 = vld [vmem:[%s5 + $0x20] sm:$0xf]
  %v527 = vld [vmem:[%s5 + $0x24] sm:$0xf]
  %v528 = vld [vmem:[%s5 + $0x28] sm:$0xf]
  %v529 = vld [vmem:[%s5 + $0x2c] sm:$0xf]
  %v530 = vld [vmem:[%s5 + $0x30] sm:$0xf]
  %v531 = vld [vmem:[%s5 + $0x34] sm:$0xf]
  %v532 = vld [vmem:[%s5 + $0x38] sm:$0xf]
  %v533 = vld [vmem:[%s5 + $0x3c] sm:$0xf]
  %v534 = vld [vmem:[%s6] sm:$0x1]
  %v536 = vlaneseq
  %v537 = vshrl.u32 %v536, 7
  %v538 = vsub.s32 0, %v537
  %v539 = vrot.slane %v534, %v538
  %v557 = vunpack.c.l.b16 %v518
  %v558 = vunpack.c.l.b16 %v519
  %v559 = vunpack.c.l.b16 %v520
  %v560 = vunpack.c.l.b16 %v521
  %v561 = vunpack.c.l.b16 %v522
  %v562 = vunpack.c.l.b16 %v523
  %v563 = vunpack.c.l.b16 %v524
  %v564 = vunpack.c.l.b16 %v525
  %v565 = vunpack.c.l.b16 %v526
  %v566 = vunpack.c.l.b16 %v527
  %v567 = vunpack.c.l.b16 %v528
  %v568 = vunpack.c.l.b16 %v529
  %v569 = vunpack.c.l.b16 %v530
  %v570 = vunpack.c.l.b16 %v531
  %v571 = vunpack.c.l.b16 %v532
  %v572 = vunpack.c.l.b16 %v533
  %v573 = vpack.c.b16 %v558, %v557
  %v574 = vpack.c.b16 %v560, %v559
  %v575 = vpack.c.b16 %v562, %v561
  %v576 = vpack.c.b16 %v564, %v563
  %v577 = vpack.c.b16 %v566, %v565
  %v578 = vpack.c.b16 %v568, %v567
  %v579 = vpack.c.b16 %v570, %v569
  %v580 = vpack.c.b16 %v572, %v571
  %589 = vmatprep.subr.bf16.mxu0 0
  %590 = vmatpush1.bf16.msra.mxu0 %v573
  %591 = vmatprep.subr.bf16.mxu0 0
  %592 = vmatpush1.bf16.msra.mxu0 %v574
  %593 = vmatprep.subr.bf16.mxu0 0
  %594 = vmatpush1.bf16.msra.mxu0 %v575
  %595 = vmatprep.subr.bf16.mxu0 0
  %596 = vmatpush1.bf16.msra.mxu0 %v576
  %597 = vmatprep.subr.bf16.mxu0 0
  %598 = vmatpush1.bf16.msra.mxu0 %v577
  %599 = vmatprep.subr.bf16.mxu0 0
  %600 = vmatpush1.bf16.msra.mxu0 %v578
  %601 = vmatprep.subr.bf16.mxu0 0
  %602 = vmatpush1.bf16.msra.mxu0 %v579
  %603 = vmatprep.subr.bf16.mxu0 0
  %604 = vmatpush1.bf16.msra.mxu0 %v580
  %605 = vmatprep.subr.bf16.mxu0 0
  %606 = vmatpush1.bf16.msra.mxu0 0
  %607 = vmatprep.subr.bf16.mxu0 0
  %608 = vmatpush1.bf16.msra.mxu0 0
  %609 = vmatprep.subr.bf16.mxu0 0
  %610 = vmatpush1.bf16.msra.mxu0 0
  %611 = vmatprep.subr.bf16.mxu0 0
  %612 = vmatpush1.bf16.msra.mxu0 0
  %613 = vmatprep.subr.bf16.mxu0 0
  %614 = vmatpush1.bf16.msra.mxu0 0
  %615 = vmatprep.subr.bf16.mxu0 0
  %616 = vmatpush1.bf16.msra.mxu0 0
  %617 = vmatprep.subr.bf16.mxu0 0
  %618 = vmatpush1.bf16.msra.mxu0 0
  %619 = vmatprep.subr.bf16.mxu0 0
  %620 = vmatpush1.bf16.msra.mxu0 0
  %621 = vmatprep.mubr.bf16.mxu0 0
  %622 = vmatmul.mubr.bf16.gmra.mrb[0].mxu0 %v517
  %v623 = vpop.f32.mrb[0].mxu0
  %v624 = vadd.f32 %v539, %v623
  %v625 = vpop.f32.mrb[0].mxu0
  %v626 = vpop.f32.mrb[0].mxu0
  %v627 = vadd.f32 %v539, %v626
  %v628 = vpop.f32.mrb[0].mxu0
  %629 = vdwg.mxu0
  %v630 = vmul.f32 %v624, 0.01
  %v631 = vmul.f32 %v627, 0.01
  %v632 = vmax.f32 %v624, %v630
  %v633 = vmax.f32 %v627, %v631
  %634 = vst [vmem:[%s7] sm:$0xff] %v632
  %635 = vst [vmem:[%s7 + $0x8] sm:$0xff] %v633
  // Predicated region
  $region30: #{lenet_forward.5} parent=0 // pred_check
    _
  $region31: #{lenet_forward.5} parent=0 // pred_check_branch
    %637 = sbr.rel (0) target = $region33
  $region32: #{lenet_forward.5} parent=0 // pred_region
    _
  $region33: #{lenet_forward.5} parent=0 // pred_fallthru
    _
  // Predicated region
  $region34: #{lenet_forward.5} parent=0 // pred_check
    _
  $region35: #{lenet_forward.5} parent=0 // pred_check_branch
    %639 = sbr.rel (0) target = $region37
  $region36: #{lenet_forward.5} parent=0 // pred_region
    _
  $region37: #{lenet_forward.5} parent=0 // pred_fallthru
    _

// kernel: lenet_forward.4
$region0: #{lenet_forward.4}
  #allocation0 [shape = 'u32[]', space=smem, size = 0x4, offset = 0x4, fixed_abs, tag = 'smem constant byte address 0x4 - core index']
  #allocation1 [shape = 'u32[144,128]{1,0:T(1,128)}', space=vmem, size = 0x12000, scoped, tag = 'internal scratch']
  %s0 = inlined_call_operand.vmem [shape: bf16[16,768], index: 0, kind: input, shape index: {}]
  %s1 = inlined_call_operand.hbm [shape: bf16[768,512], index: 1, kind: input, shape index: {}]
  %s2 = inlined_call_operand.vmem [shape: f32[1,128], index: 2, kind: input, shape index: {}]
  %s3 = inlined_call_operand.vmem [shape: bf16[16,128], index: 3, kind: output, shape index: {}]
  %s4 = sld [smem:[#allocation0]]
  $region26: #{lenet_forward.4} parent=0
    _
  %s6 = ssub.s32 1, %s4
  %s7 = scalar_select 0, %s6, %s4
  $region1: #{lenet_forward.4} parent=0
    #allocation2 [shape = 'u8[786432]{0}', space=vmem, size = 0xc0000, scoped, tag = 'input window, operand 1, single buffered']
    #allocation3 [shape = 's32[1]{0}', space=sflag, size = 0x4, scoped, tag = 'scoped memory for lenet_forward.4']
    %8 = vsyncpa [#allocation3], 0
    // Predicated region
    $region2: #{lenet_forward.4} parent=1 // pred_check
      _
    $region3: #{lenet_forward.4} parent=1 // pred_check_branch
      %10 = sbr.rel (0) target = $region5
    $region4: #{lenet_forward.4} parent=1 // pred_region
      _
    $region5: #{lenet_forward.4} parent=1 // pred_fallthru
      _
    // Predicated region
    $region6: #{lenet_forward.4} parent=1 // pred_check
      _
    $region7: #{lenet_forward.4} parent=1 // pred_check_branch
      %12 = sbr.rel (0) target = $region9
    $region8: #{lenet_forward.4} parent=1 // pred_region
      %s14 = ssub.s32 24576, 24576
      %15 = vsyncadd [#allocation3], %s14
      %s16 = sshll.u32 [#allocation2], 4
      %s17 = int_to_ptr.vmem [resolvable:$true] %s16
      %22 = dma.hbm_to_vmem [thread:$0]  %s1, 24576, %s17, [#allocation3], 256, 256, 16
    $region9: #{lenet_forward.4} parent=1 // pred_fallthru
      _
    // Predicated region
    $region10: #{lenet_forward.4} parent=1 // pred_check
      _
    $region11: #{lenet_forward.4} parent=1 // pred_check_branch
      %24 = sbr.rel (0) target = $region13
    $region12: #{lenet_forward.4} parent=1 // pred_region
      _
    $region13: #{lenet_forward.4} parent=1 // pred_fallthru
      _
    // Predicated region
    $region14: #{lenet_forward.4} parent=1 // pred_check
      _
    $region15: #{lenet_forward.4} parent=1 // pred_check_branch
      %26 = sbr.rel (0) target = $region17
    $region16: #{lenet_forward.4} parent=1 // pred_region
      %27 = dma.done [#allocation3], 24576
    $region17: #{lenet_forward.4} parent=1 // pred_fallthru
      _
    %v28 = vld [vmem:[%s0] sm:$0xff]
    %v29 = vld [vmem:[%s0 + $0x8] sm:$0xff]
    %v30 = vld [vmem:[%s0 + $0x10] sm:$0xff]
    %v31 = vld [vmem:[%s0 + $0x18] sm:$0xff]
    %v32 = vld [vmem:[%s0 + $0x20] sm:$0xff]
    %v33 = vld [vmem:[%s0 + $0x28] sm:$0xff]
    %v34 = vld [vmem:[#allocation2] sm:$0xff]
    %v35 = vld [vmem:[#allocation2 + $0x8] sm:$0xff]
    %v36 = vld [vmem:[#allocation2 + $0x10] sm:$0xff]
    %v37 = vld [vmem:[#allocation2 + $0x18] sm:$0xff]
    %v38 = vld [vmem:[#allocation2 + $0x20] sm:$0xff]
    %v39 = vld [vmem:[#allocation2 + $0x28] sm:$0xff]
    %v40 = vld [vmem:[#allocation2 + $0x30] sm:$0xff]
    %v41 = vld [vmem:[#allocation2 + $0x38] sm:$0xff]
    %v42 = vld [vmem:[#allocation2 + $0x40] sm:$0xff]
    %v43 = vld [vmem:[#allocation2 + $0x48] sm:$0xff]
    %v44 = vld [vmem:[#allocation2 + $0x50] sm:$0xff]
    %v45 = vld [vmem:[#allocation2 + $0x58] sm:$0xff]
    %v46 = vld [vmem:[#allocation2 + $0x60] sm:$0xff]
    %v47 = vld [vmem:[#allocation2 + $0x68] sm:$0xff]
    %v48 = vld [vmem:[#allocation2 + $0x70] sm:$0xff]
    %v49 = vld [vmem:[#allocation2 + $0x78] sm:$0xff]
    %v50 = vld [vmem:[#allocation2 + $0x80] sm:$0xff]
    %v51 = vld [vmem:[#allocation2 + $0x88] sm:$0xff]
    %v52 = vld [vmem:[#allocation2 + $0x90] sm:$0xff]
    %v53 = vld [vmem:[#allocation2 + $0x98] sm:$0xff]
    %v54 = vld [vmem:[#allocation2 + $0xa0] sm:$0xff]
    %v55 = vld [vmem:[#allocation2 + $0xa8] sm:$0xff]
    %v56 = vld [vmem:[#allocation2 + $0xb0] sm:$0xff]
    %v57 = vld [vmem:[#allocation2 + $0xb8] sm:$0xff]
    %v58 = vld [vmem:[#allocation2 + $0xc0] sm:$0xff]
    %v59 = vld [vmem:[#allocation2 + $0xc8] sm:$0xff]
    %v60 = vld [vmem:[#allocation2 + $0xd0] sm:$0xff]
    %v61 = vld [vmem:[#allocation2 + $0xd8] sm:$0xff]
    %v62 = vld [vmem:[#allocation2 + $0xe0] sm:$0xff]
    %v63 = vld [vmem:[#allocation2 + $0xe8] sm:$0xff]
    %v64 = vld [vmem:[#allocation2 + $0xf0] sm:$0xff]
    %v65 = vld [vmem:[#allocation2 + $0xf8] sm:$0xff]
    %v66 = vld [vmem:[#allocation2 + $0x100] sm:$0xff]
    %v67 = vld [vmem:[#allocation2 + $0x108] sm:$0xff]
    %v68 = vld [vmem:[#allocation2 + $0x110] sm:$0xff]
    %v69 = vld [vmem:[#allocation2 + $0x118] sm:$0xff]
    %v70 = vld [vmem:[#allocation2 + $0x120] sm:$0xff]
    %v71 = vld [vmem:[#allocation2 + $0x128] sm:$0xff]
    %v72 = vld [vmem:[#allocation2 + $0x130] sm:$0xff]
    %v73 = vld [vmem:[#allocation2 + $0x138] sm:$0xff]
    %v74 = vld [vmem:[#allocation2 + $0x140] sm:$0xff]
    %v75 = vld [vmem:[#allocation2 + $0x148] sm:$0xff]
    %v76 = vld [vmem:[#allocation2 + $0x150] sm:$0xff]
    %v77 = vld [vmem:[#allocation2 + $0x158] sm:$0xff]
    %v78 = vld [vmem:[#allocation2 + $0x160] sm:$0xff]
    %v79 = vld [vmem:[#allocation2 + $0x168] sm:$0xff]
    %v80 = vld [vmem:[#allocation2 + $0x170] sm:$0xff]
    %v81 = vld [vmem:[#allocation2 + $0x178] sm:$0xff]
    %v82 = vld [vmem:[#allocation2 + $0x180] sm:$0xff]
    %v83 = vld [vmem:[#allocation2 + $0x188] sm:$0xff]
    %v84 = vld [vmem:[#allocation2 + $0x190] sm:$0xff]
    %v85 = vld [vmem:[#allocation2 + $0x198] sm:$0xff]
    %v86 = vld [vmem:[#allocation2 + $0x1a0] sm:$0xff]
    %v87 = vld [vmem:[#allocation2 + $0x1a8] sm:$0xff]
    %v88 = vld [vmem:[#allocation2 + $0x1b0] sm:$0xff]
    %v89 = vld [vmem:[#allocation2 + $0x1b8] sm:$0xff]
    %v90 = vld [vmem:[#allocation2 + $0x1c0] sm:$0xff]
    %v91 = vld [vmem:[#allocation2 + $0x1c8] sm:$0xff]
    %v92 = vld [vmem:[#allocation2 + $0x1d0] sm:$0xff]
    %v93 = vld [vmem:[#allocation2 + $0x1d8] sm:$0xff]
    %v94 = vld [vmem:[#allocation2 + $0x1e0] sm:$0xff]
    %v95 = vld [vmem:[#allocation2 + $0x1e8] sm:$0xff]
    %v96 = vld [vmem:[#allocation2 + $0x1f0] sm:$0xff]
    %v97 = vld [vmem:[#allocation2 + $0x1f8] sm:$0xff]
    %v98 = vld [vmem:[#allocation2 + $0x200] sm:$0xff]
    %v99 = vld [vmem:[#allocation2 + $0x208] sm:$0xff]
    %v100 = vld [vmem:[#allocation2 + $0x210] sm:$0xff]
    %v101 = vld [vmem:[#allocation2 + $0x218] sm:$0xff]
    %v102 = vld [vmem:[#allocation2 + $0x220] sm:$0xff]
    %v103 = vld [vmem:[#allocation2 + $0x228] sm:$0xff]
    %v104 = vld [vmem:[#allocation2 + $0x230] sm:$0xff]
    %v105 = vld [vmem:[#allocation2 + $0x238] sm:$0xff]
    %v106 = vld [vmem:[#allocation2 + $0x240] sm:$0xff]
    %v107 = vld [vmem:[#allocation2 + $0x248] sm:$0xff]
    %v108 = vld [vmem:[#allocation2 + $0x250] sm:$0xff]
    %v109 = vld [vmem:[#allocation2 + $0x258] sm:$0xff]
    %v110 = vld [vmem:[#allocation2 + $0x260] sm:$0xff]
    %v111 = vld [vmem:[#allocation2 + $0x268] sm:$0xff]
    %v112 = vld [vmem:[#allocation2 + $0x270] sm:$0xff]
    %v113 = vld [vmem:[#allocation2 + $0x278] sm:$0xff]
    %v114 = vld [vmem:[#allocation2 + $0x280] sm:$0xff]
    %v115 = vld [vmem:[#allocation2 + $0x288] sm:$0xff]
    %v116 = vld [vmem:[#allocation2 + $0x290] sm:$0xff]
    %v117 = vld [vmem:[#allocation2 + $0x298] sm:$0xff]
    %v118 = vld [vmem:[#allocation2 + $0x2a0] sm:$0xff]
    %v119 = vld [vmem:[#allocation2 + $0x2a8] sm:$0xff]
    %v120 = vld [vmem:[#allocation2 + $0x2b0] sm:$0xff]
    %v121 = vld [vmem:[#allocation2 + $0x2b8] sm:$0xff]
    %v122 = vld [vmem:[#allocation2 + $0x2c0] sm:$0xff]
    %v123 = vld [vmem:[#allocation2 + $0x2c8] sm:$0xff]
    %v124 = vld [vmem:[#allocation2 + $0x2d0] sm:$0xff]
    %v125 = vld [vmem:[#allocation2 + $0x2d8] sm:$0xff]
    %v126 = vld [vmem:[#allocation2 + $0x2e0] sm:$0xff]
    %v127 = vld [vmem:[#allocation2 + $0x2e8] sm:$0xff]
    %v128 = vld [vmem:[#allocation2 + $0x2f0] sm:$0xff]
    %v129 = vld [vmem:[#allocation2 + $0x2f8] sm:$0xff]
    %v130 = vld [vmem:[#allocation2 + $0x300] sm:$0xff]
    %v131 = vld [vmem:[#allocation2 + $0x308] sm:$0xff]
    %v132 = vld [vmem:[#allocation2 + $0x310] sm:$0xff]
    %v133 = vld [vmem:[#allocation2 + $0x318] sm:$0xff]
    %v134 = vld [vmem:[#allocation2 + $0x320] sm:$0xff]
    %v135 = vld [vmem:[#allocation2 + $0x328] sm:$0xff]
    %v136 = vld [vmem:[#allocation2 + $0x330] sm:$0xff]
    %v137 = vld [vmem:[#allocation2 + $0x338] sm:$0xff]
    %v138 = vld [vmem:[#allocation2 + $0x340] sm:$0xff]
    %v139 = vld [vmem:[#allocation2 + $0x348] sm:$0xff]
    %v140 = vld [vmem:[#allocation2 + $0x350] sm:$0xff]
    %v141 = vld [vmem:[#allocation2 + $0x358] sm:$0xff]
    %v142 = vld [vmem:[#allocation2 + $0x360] sm:$0xff]
    %v143 = vld [vmem:[#allocation2 + $0x368] sm:$0xff]
    %v144 = vld [vmem:[#allocation2 + $0x370] sm:$0xff]
    %v145 = vld [vmem:[#allocation2 + $0x378] sm:$0xff]
    %v146 = vld [vmem:[#allocation2 + $0x380] sm:$0xff]
    %v147 = vld [vmem:[#allocation2 + $0x388] sm:$0xff]
    %v148 = vld [vmem:[#allocation2 + $0x390] sm:$0xff]
    %v149 = vld [vmem:[#allocation2 + $0x398] sm:$0xff]
    %v150 = vld [vmem:[#allocation2 + $0x3a0] sm:$0xff]
    %v151 = vld [vmem:[#allocation2 + $0x3a8] sm:$0xff]
    %v152 = vld [vmem:[#allocation2 + $0x3b0] sm:$0xff]
    %v153 = vld [vmem:[#allocation2 + $0x3b8] sm:$0xff]
    %v154 = vld [vmem:[#allocation2 + $0x3c0] sm:$0xff]
    %v155 = vld [vmem:[#allocation2 + $0x3c8] sm:$0xff]
    %v156 = vld [vmem:[#allocation2 + $0x3d0] sm:$0xff]
    %v157 = vld [vmem:[#allocation2 + $0x3d8] sm:$0xff]
    %v158 = vld [vmem:[#allocation2 + $0x3e0] sm:$0xff]
    %v159 = vld [vmem:[#allocation2 + $0x3e8] sm:$0xff]
    %v160 = vld [vmem:[#allocation2 + $0x3f0] sm:$0xff]
    %v161 = vld [vmem:[#allocation2 + $0x3f8] sm:$0xff]
    %v162 = vld [vmem:[#allocation2 + $0x400] sm:$0xff]
    %v163 = vld [vmem:[#allocation2 + $0x408] sm:$0xff]
    %v164 = vld [vmem:[#allocation2 + $0x410] sm:$0xff]
    %v165 = vld [vmem:[#allocation2 + $0x418] sm:$0xff]
    %v166 = vld [vmem:[#allocation2 + $0x420] sm:$0xff]
    %v167 = vld [vmem:[#allocation2 + $0x428] sm:$0xff]
    %v168 = vld [vmem:[#allocation2 + $0x430] sm:$0xff]
    %v169 = vld [vmem:[#allocation2 + $0x438] sm:$0xff]
    %v170 = vld [vmem:[#allocation2 + $0x440] sm:$0xff]
    %v171 = vld [vmem:[#allocation2 + $0x448] sm:$0xff]
    %v172 = vld [vmem:[#allocation2 + $0x450] sm:$0xff]
    %v173 = vld [vmem:[#allocation2 + $0x458] sm:$0xff]
    %v174 = vld [vmem:[#allocation2 + $0x460] sm:$0xff]
    %v175 = vld [vmem:[#allocation2 + $0x468] sm:$0xff]
    %v176 = vld [vmem:[#allocation2 + $0x470] sm:$0xff]
    %v177 = vld [vmem:[#allocation2 + $0x478] sm:$0xff]
    %v178 = vld [vmem:[#allocation2 + $0x480] sm:$0xff]
    %v179 = vld [vmem:[#allocation2 + $0x488] sm:$0xff]
    %v180 = vld [vmem:[#allocation2 + $0x490] sm:$0xff]
    %v181 = vld [vmem:[#allocation2 + $0x498] sm:$0xff]
    %v182 = vld [vmem:[#allocation2 + $0x4a0] sm:$0xff]
    %v183 = vld [vmem:[#allocation2 + $0x4a8] sm:$0xff]
    %v184 = vld [vmem:[#allocation2 + $0x4b0] sm:$0xff]
    %v185 = vld [vmem:[#allocation2 + $0x4b8] sm:$0xff]
    %v186 = vld [vmem:[#allocation2 + $0x4c0] sm:$0xff]
    %v187 = vld [vmem:[#allocation2 + $0x4c8] sm:$0xff]
    %v188 = vld [vmem:[#allocation2 + $0x4d0] sm:$0xff]
    %v189 = vld [vmem:[#allocation2 + $0x4d8] sm:$0xff]
    %v190 = vld [vmem:[#allocation2 + $0x4e0] sm:$0xff]
    %v191 = vld [vmem:[#allocation2 + $0x4e8] sm:$0xff]
    %v192 = vld [vmem:[#allocation2 + $0x4f0] sm:$0xff]
    %v193 = vld [vmem:[#allocation2 + $0x4f8] sm:$0xff]
    %v194 = vld [vmem:[#allocation2 + $0x500] sm:$0xff]
    %v195 = vld [vmem:[#allocation2 + $0x508] sm:$0xff]
    %v196 = vld [vmem:[#allocation2 + $0x510] sm:$0xff]
    %v197 = vld [vmem:[#allocation2 + $0x518] sm:$0xff]
    %v198 = vld [vmem:[#allocation2 + $0x520] sm:$0xff]
    %v199 = vld [vmem:[#allocation2 + $0x528] sm:$0xff]
    %v200 = vld [vmem:[#allocation2 + $0x530] sm:$0xff]
    %v201 = vld [vmem:[#allocation2 + $0x538] sm:$0xff]
    %v202 = vld [vmem:[#allocation2 + $0x540] sm:$0xff]
    %v203 = vld [vmem:[#allocation2 + $0x548] sm:$0xff]
    %v204 = vld [vmem:[#allocation2 + $0x550] sm:$0xff]
    %v205 = vld [vmem:[#allocation2 + $0x558] sm:$0xff]
    %v206 = vld [vmem:[#allocation2 + $0x560] sm:$0xff]
    %v207 = vld [vmem:[#allocation2 + $0x568] sm:$0xff]
    %v208 = vld [vmem:[#allocation2 + $0x570] sm:$0xff]
    %v209 = vld [vmem:[#allocation2 + $0x578] sm:$0xff]
    %v210 = vld [vmem:[#allocation2 + $0x580] sm:$0xff]
    %v211 = vld [vmem:[#allocation2 + $0x588] sm:$0xff]
    %v212 = vld [vmem:[#allocation2 + $0x590] sm:$0xff]
    %v213 = vld [vmem:[#allocation2 + $0x598] sm:$0xff]
    %v214 = vld [vmem:[#allocation2 + $0x5a0] sm:$0xff]
    %v215 = vld [vmem:[#allocation2 + $0x5a8] sm:$0xff]
    %v216 = vld [vmem:[#allocation2 + $0x5b0] sm:$0xff]
    %v217 = vld [vmem:[#allocation2 + $0x5b8] sm:$0xff]
    %v218 = vld [vmem:[#allocation2 + $0x5c0] sm:$0xff]
    %v219 = vld [vmem:[#allocation2 + $0x5c8] sm:$0xff]
    %v220 = vld [vmem:[#allocation2 + $0x5d0] sm:$0xff]
    %v221 = vld [vmem:[#allocation2 + $0x5d8] sm:$0xff]
    %v222 = vld [vmem:[#allocation2 + $0x5e0] sm:$0xff]
    %v223 = vld [vmem:[#allocation2 + $0x5e8] sm:$0xff]
    %v224 = vld [vmem:[#allocation2 + $0x5f0] sm:$0xff]
    %v225 = vld [vmem:[#allocation2 + $0x5f8] sm:$0xff]
    %v232 = vunpack.c.l.b16 %v28
    %v233 = vunpack.c.h.b16 %v28
    %v234 = vunpack.c.l.b16 %v29
    %v235 = vunpack.c.h.b16 %v29
    %v236 = vunpack.c.l.b16 %v30
    %v237 = vunpack.c.h.b16 %v30
    %v238 = vunpack.c.l.b16 %v31
    %v239 = vunpack.c.h.b16 %v31
    %v240 = vunpack.c.l.b16 %v32
    %v241 = vunpack.c.h.b16 %v32
    %v242 = vunpack.c.l.b16 %v33
    %v243 = vunpack.c.h.b16 %v33
    %v244 = vpack.c.b16 %v238, %v232
    %v245 = vpack.c.b16 %v239, %v233
    %v246 = vpack.c.b16 %v240, %v234
    %v247 = vpack.c.b16 %v241, %v235
    %v248 = vpack.c.b16 %v242, %v236
    %v249 = vpack.c.b16 %v243, %v237
    %v448 = vunpack.c.l.b16 %v34
    %v449 = vunpack.c.h.b16 %v34
    %v450 = vunpack.c.l.b16 %v35
    %v451 = vunpack.c.h.b16 %v35
    %v452 = vunpack.c.l.b16 %v36
    %v453 = vunpack.c.h.b16 %v36
    %v454 = vunpack.c.l.b16 %v37
    %v455 = vunpack.c.h.b16 %v37
    %v456 = vunpack.c.l.b16 %v38
    %v457 = vunpack.c.h.b16 %v38
    %v458 = vunpack.c.l.b16 %v39
    %v459 = vunpack.c.h.b16 %v39
    %v460 = vunpack.c.l.b16 %v40
    %v461 = vunpack.c.h.b16 %v40
    %v462 = vunpack.c.l.b16 %v41
    %v463 = vunpack.c.h.b16 %v41
    %v464 = vunpack.c.l.b16 %v42
    %v465 = vunpack.c.h.b16 %v42
    %v466 = vunpack.c.l.b16 %v43
    %v467 = vunpack.c.h.b16 %v43
    %v468 = vunpack.c.l.b16 %v44
    %v469 = vunpack.c.h.b16 %v44
    %v470 = vunpack.c.l.b16 %v45
    %v471 = vunpack.c.h.b16 %v45
    %v472 = vunpack.c.l.b16 %v46
    %v473 = vunpack.c.h.b16 %v46
    %v474 = vunpack.c.l.b16 %v47
    %v475 = vunpack.c.h.b16 %v47
    %v476 = vunpack.c.l.b16 %v48
    %v477 = vunpack.c.h.b16 %v48
    %v478 = vunpack.c.l.b16 %v49
    %v479 = vunpack.c.h.b16 %v49
    %v480 = vunpack.c.l.b16 %v50
    %v481 = vunpack.c.h.b16 %v50
    %v482 = vunpack.c.l.b16 %v51
    %v483 = vunpack.c.h.b16 %v51
    %v484 = vunpack.c.l.b16 %v52
    %v485 = vunpack.c.h.b16 %v52
    %v486 = vunpack.c.l.b16 %v53
    %v487 = vunpack.c.h.b16 %v53
    %v488 = vunpack.c.l.b16 %v54
    %v489 = vunpack.c.h.b16 %v54
    %v490 = vunpack.c.l.b16 %v55
    %v491 = vunpack.c.h.b16 %v55
    %v492 = vunpack.c.l.b16 %v56
    %v493 = vunpack.c.h.b16 %v56
    %v494 = vunpack.c.l.b16 %v57
    %v495 = vunpack.c.h.b16 %v57
    %v496 = vunpack.c.l.b16 %v58
    %v497 = vunpack.c.h.b16 %v58
    %v498 = vunpack.c.l.b16 %v59
    %v499 = vunpack.c.h.b16 %v59
    %v500 = vunpack.c.l.b16 %v60
    %v501 = vunpack.c.h.b16 %v60
    %v502 = vunpack.c.l.b16 %v61
    %v503 = vunpack.c.h.b16 %v61
    %v504 = vunpack.c.l.b16 %v62
    %v505 = vunpack.c.h.b16 %v62
    %v506 = vunpack.c.l.b16 %v63
    %v507 = vunpack.c.h.b16 %v63
    %v508 = vunpack.c.l.b16 %v64
    %v509 = vunpack.c.h.b16 %v64
    %v510 = vunpack.c.l.b16 %v65
    %v511 = vunpack.c.h.b16 %v65
    %v512 = vunpack.c.l.b16 %v66
    %v513 = vunpack.c.h.b16 %v66
    %v514 = vunpack.c.l.b16 %v67
    %v515 = vunpack.c.h.b16 %v67
    %v516 = vunpack.c.l.b16 %v68
    %v517 = vunpack.c.h.b16 %v68
    %v518 = vunpack.c.l.b16 %v69
    %v519 = vunpack.c.h.b16 %v69
    %v520 = vunpack.c.l.b16 %v70
    %v521 = vunpack.c.h.b16 %v70
    %v522 = vunpack.c.l.b16 %v71
    %v523 = vunpack.c.h.b16 %v71
    %v524 = vunpack.c.l.b16 %v72
    %v525 = vunpack.c.h.b16 %v72
    %v526 = vunpack.c.l.b16 %v73
    %v527 = vunpack.c.h.b16 %v73
    %v528 = vunpack.c.l.b16 %v74
    %v529 = vunpack.c.h.b16 %v74
    %v530 = vunpack.c.l.b16 %v75
    %v531 = vunpack.c.h.b16 %v75
    %v532 = vunpack.c.l.b16 %v76
    %v533 = vunpack.c.h.b16 %v76
    %v534 = vunpack.c.l.b16 %v77
    %v535 = vunpack.c.h.b16 %v77
    %v536 = vunpack.c.l.b16 %v78
    %v537 = vunpack.c.h.b16 %v78
    %v538 = vunpack.c.l.b16 %v79
    %v539 = vunpack.c.h.b16 %v79
    %v540 = vunpack.c.l.b16 %v80
    %v541 = vunpack.c.h.b16 %v80
    %v542 = vunpack.c.l.b16 %v81
    %v543 = vunpack.c.h.b16 %v81
    %v544 = vunpack.c.l.b16 %v82
    %v545 = vunpack.c.h.b16 %v82
    %v546 = vunpack.c.l.b16 %v83
    %v547 = vunpack.c.h.b16 %v83
    %v548 = vunpack.c.l.b16 %v84
    %v549 = vunpack.c.h.b16 %v84
    %v550 = vunpack.c.l.b16 %v85
    %v551 = vunpack.c.h.b16 %v85
    %v552 = vunpack.c.l.b16 %v86
    %v553 = vunpack.c.h.b16 %v86
    %v554 = vunpack.c.l.b16 %v87
    %v555 = vunpack.c.h.b16 %v87
    %v556 = vunpack.c.l.b16 %v88
    %v557 = vunpack.c.h.b16 %v88
    %v558 = vunpack.c.l.b16 %v89
    %v559 = vunpack.c.h.b16 %v89
    %v560 = vunpack.c.l.b16 %v90
    %v561 = vunpack.c.h.b16 %v90
    %v562 = vunpack.c.l.b16 %v91
    %v563 = vunpack.c.h.b16 %v91
    %v564 = vunpack.c.l.b16 %v92
    %v565 = vunpack.c.h.b16 %v92
    %v566 = vunpack.c.l.b16 %v93
    %v567 = vunpack.c.h.b16 %v93
    %v568 = vunpack.c.l.b16 %v94
    %v569 = vunpack.c.h.b16 %v94
    %v570 = vunpack.c.l.b16 %v95
    %v571 = vunpack.c.h.b16 %v95
    %v572 = vunpack.c.l.b16 %v96
    %v573 = vunpack.c.h.b16 %v96
    %v574 = vunpack.c.l.b16 %v97
    %v575 = vunpack.c.h.b16 %v97
    %v576 = vunpack.c.l.b16 %v98
    %v577 = vunpack.c.h.b16 %v98
    %v578 = vunpack.c.l.b16 %v99
    %v579 = vunpack.c.h.b16 %v99
    %v580 = vunpack.c.l.b16 %v100
    %v581 = vunpack.c.h.b16 %v100
    %v582 = vunpack.c.l.b16 %v101
    %v583 = vunpack.c.h.b16 %v101
    %v584 = vunpack.c.l.b16 %v102
    %v585 = vunpack.c.h.b16 %v102
    %v586 = vunpack.c.l.b16 %v103
    %v587 = vunpack.c.h.b16 %v103
    %v588 = vunpack.c.l.b16 %v104
    %v589 = vunpack.c.h.b16 %v104
    %v590 = vunpack.c.l.b16 %v105
    %v591 = vunpack.c.h.b16 %v105
    %v592 = vunpack.c.l.b16 %v106
    %v593 = vunpack.c.h.b16 %v106
    %v594 = vunpack.c.l.b16 %v107
    %v595 = vunpack.c.h.b16 %v107
    %v596 = vunpack.c.l.b16 %v108
    %v597 = vunpack.c.h.b16 %v108
    %v598 = vunpack.c.l.b16 %v109
    %v599 = vunpack.c.h.b16 %v109
    %v600 = vunpack.c.l.b16 %v110
    %v601 = vunpack.c.h.b16 %v110
    %v602 = vunpack.c.l.b16 %v111
    %v603 = vunpack.c.h.b16 %v111
    %v604 = vunpack.c.l.b16 %v112
    %v605 = vunpack.c.h.b16 %v112
    %v606 = vunpack.c.l.b16 %v113
    %v607 = vunpack.c.h.b16 %v113
    %v608 = vunpack.c.l.b16 %v114
    %v609 = vunpack.c.h.b16 %v114
    %v610 = vunpack.c.l.b16 %v115
    %v611 = vunpack.c.h.b16 %v115
    %v612 = vunpack.c.l.b16 %v116
    %v613 = vunpack.c.h.b16 %v116
    %v614 = vunpack.c.l.b16 %v117
    %v615 = vunpack.c.h.b16 %v117
    %v616 = vunpack.c.l.b16 %v118
    %v617 = vunpack.c.h.b16 %v118
    %v618 = vunpack.c.l.b16 %v119
    %v619 = vunpack.c.h.b16 %v119
    %v620 = vunpack.c.l.b16 %v120
    %v621 = vunpack.c.h.b16 %v120
    %v622 = vunpack.c.l.b16 %v121
    %v623 = vunpack.c.h.b16 %v121
    %v624 = vunpack.c.l.b16 %v122
    %v625 = vunpack.c.h.b16 %v122
    %v626 = vunpack.c.l.b16 %v123
    %v627 = vunpack.c.h.b16 %v123
    %v628 = vunpack.c.l.b16 %v124
    %v629 = vunpack.c.h.b16 %v124
    %v630 = vunpack.c.l.b16 %v125
    %v631 = vunpack.c.h.b16 %v125
    %v632 = vunpack.c.l.b16 %v126
    %v633 = vunpack.c.h.b16 %v126
    %v634 = vunpack.c.l.b16 %v127
    %v635 = vunpack.c.h.b16 %v127
    %v636 = vunpack.c.l.b16 %v128
    %v637 = vunpack.c.h.b16 %v128
    %v638 = vunpack.c.l.b16 %v129
    %v639 = vunpack.c.h.b16 %v129
    %v640 = vunpack.c.l.b16 %v130
    %v641 = vunpack.c.h.b16 %v130
    %v642 = vunpack.c.l.b16 %v131
    %v643 = vunpack.c.h.b16 %v131
    %v644 = vunpack.c.l.b16 %v132
    %v645 = vunpack.c.h.b16 %v132
    %v646 = vunpack.c.l.b16 %v133
    %v647 = vunpack.c.h.b16 %v133
    %v648 = vunpack.c.l.b16 %v134
    %v649 = vunpack.c.h.b16 %v134
    %v650 = vunpack.c.l.b16 %v135
    %v651 = vunpack.c.h.b16 %v135
    %v652 = vunpack.c.l.b16 %v136
    %v653 = vunpack.c.h.b16 %v136
    %v654 = vunpack.c.l.b16 %v137
    %v655 = vunpack.c.h.b16 %v137
    %v656 = vunpack.c.l.b16 %v138
    %v657 = vunpack.c.h.b16 %v138
    %v658 = vunpack.c.l.b16 %v139
    %v659 = vunpack.c.h.b16 %v139
    %v660 = vunpack.c.l.b16 %v140
    %v661 = vunpack.c.h.b16 %v140
    %v662 = vunpack.c.l.b16 %v141
    %v663 = vunpack.c.h.b16 %v141
    %v664 = vunpack.c.l.b16 %v142
    %v665 = vunpack.c.h.b16 %v142
    %v666 = vunpack.c.l.b16 %v143
    %v667 = vunpack.c.h.b16 %v143
    %v668 = vunpack.c.l.b16 %v144
    %v669 = vunpack.c.h.b16 %v144
    %v670 = vunpack.c.l.b16 %v145
    %v671 = vunpack.c.h.b16 %v145
    %v672 = vunpack.c.l.b16 %v146
    %v673 = vunpack.c.h.b16 %v146
    %v674 = vunpack.c.l.b16 %v147
    %v675 = vunpack.c.h.b16 %v147
    %v676 = vunpack.c.l.b16 %v148
    %v677 = vunpack.c.h.b16 %v148
    %v678 = vunpack.c.l.b16 %v149
    %v679 = vunpack.c.h.b16 %v149
    %v680 = vunpack.c.l.b16 %v150
    %v681 = vunpack.c.h.b16 %v150
    %v682 = vunpack.c.l.b16 %v151
    %v683 = vunpack.c.h.b16 %v151
    %v684 = vunpack.c.l.b16 %v152
    %v685 = vunpack.c.h.b16 %v152
    %v686 = vunpack.c.l.b16 %v153
    %v687 = vunpack.c.h.b16 %v153
    %v688 = vunpack.c.l.b16 %v154
    %v689 = vunpack.c.h.b16 %v154
    %v690 = vunpack.c.l.b16 %v155
    %v691 = vunpack.c.h.b16 %v155
    %v692 = vunpack.c.l.b16 %v156
    %v693 = vunpack.c.h.b16 %v156
    %v694 = vunpack.c.l.b16 %v157
    %v695 = vunpack.c.h.b16 %v157
    %v696 = vunpack.c.l.b16 %v158
    %v697 = vunpack.c.h.b16 %v158
    %v698 = vunpack.c.l.b16 %v159
    %v699 = vunpack.c.h.b16 %v159
    %v700 = vunpack.c.l.b16 %v160
    %v701 = vunpack.c.h.b16 %v160
    %v702 = vunpack.c.l.b16 %v161
    %v703 = vunpack.c.h.b16 %v161
    %v704 = vunpack.c.l.b16 %v162
    %v705 = vunpack.c.h.b16 %v162
    %v706 = vunpack.c.l.b16 %v163
    %v707 = vunpack.c.h.b16 %v163
    %v708 = vunpack.c.l.b16 %v164
    %v709 = vunpack.c.h.b16 %v164
    %v710 = vunpack.c.l.b16 %v165
    %v711 = vunpack.c.h.b16 %v165
    %v712 = vunpack.c.l.b16 %v166
    %v713 = vunpack.c.h.b16 %v166
    %v714 = vunpack.c.l.b16 %v167
    %v715 = vunpack.c.h.b16 %v167
    %v716 = vunpack.c.l.b16 %v168
    %v717 = vunpack.c.h.b16 %v168
    %v718 = vunpack.c.l.b16 %v169
    %v719 = vunpack.c.h.b16 %v169
    %v720 = vunpack.c.l.b16 %v170
    %v721 = vunpack.c.h.b16 %v170
    %v722 = vunpack.c.l.b16 %v171
    %v723 = vunpack.c.h.b16 %v171
    %v724 = vunpack.c.l.b16 %v172
    %v725 = vunpack.c.h.b16 %v172
    %v726 = vunpack.c.l.b16 %v173
    %v727 = vunpack.c.h.b16 %v173
    %v728 = vunpack.c.l.b16 %v174
    %v729 = vunpack.c.h.b16 %v174
    %v730 = vunpack.c.l.b16 %v175
    %v731 = vunpack.c.h.b16 %v175
    %v732 = vunpack.c.l.b16 %v176
    %v733 = vunpack.c.h.b16 %v176
    %v734 = vunpack.c.l.b16 %v177
    %v735 = vunpack.c.h.b16 %v177
    %v736 = vunpack.c.l.b16 %v178
    %v737 = vunpack.c.h.b16 %v178
    %v738 = vunpack.c.l.b16 %v179
    %v739 = vunpack.c.h.b16 %v179
    %v740 = vunpack.c.l.b16 %v180
    %v741 = vunpack.c.h.b16 %v180
    %v742 = vunpack.c.l.b16 %v181
    %v743 = vunpack.c.h.b16 %v181
    %v744 = vunpack.c.l.b16 %v182
    %v745 = vunpack.c.h.b16 %v182
    %v746 = vunpack.c.l.b16 %v183
    %v747 = vunpack.c.h.b16 %v183
    %v748 = vunpack.c.l.b16 %v184
    %v749 = vunpack.c.h.b16 %v184
    %v750 = vunpack.c.l.b16 %v185
    %v751 = vunpack.c.h.b16 %v185
    %v752 = vunpack.c.l.b16 %v186
    %v753 = vunpack.c.h.b16 %v186
    %v754 = vunpack.c.l.b16 %v187
    %v755 = vunpack.c.h.b16 %v187
    %v756 = vunpack.c.l.b16 %v188
    %v757 = vunpack.c.h.b16 %v188
    %v758 = vunpack.c.l.b16 %v189
    %v759 = vunpack.c.h.b16 %v189
    %v760 = vunpack.c.l.b16 %v190
    %v761 = vunpack.c.h.b16 %v190
    %v762 = vunpack.c.l.b16 %v191
    %v763 = vunpack.c.h.b16 %v191
    %v764 = vunpack.c.l.b16 %v192
    %v765 = vunpack.c.h.b16 %v192
    %v766 = vunpack.c.l.b16 %v193
    %v767 = vunpack.c.h.b16 %v193
    %v768 = vunpack.c.l.b16 %v194
    %v769 = vunpack.c.h.b16 %v194
    %v770 = vunpack.c.l.b16 %v195
    %v771 = vunpack.c.h.b16 %v195
    %v772 = vunpack.c.l.b16 %v196
    %v773 = vunpack.c.h.b16 %v196
    %v774 = vunpack.c.l.b16 %v197
    %v775 = vunpack.c.h.b16 %v197
    %v776 = vunpack.c.l.b16 %v198
    %v777 = vunpack.c.h.b16 %v198
    %v778 = vunpack.c.l.b16 %v199
    %v779 = vunpack.c.h.b16 %v199
    %v780 = vunpack.c.l.b16 %v200
    %v781 = vunpack.c.h.b16 %v200
    %v782 = vunpack.c.l.b16 %v201
    %v783 = vunpack.c.h.b16 %v201
    %v784 = vunpack.c.l.b16 %v202
    %v785 = vunpack.c.h.b16 %v202
    %v786 = vunpack.c.l.b16 %v203
    %v787 = vunpack.c.h.b16 %v203
    %v788 = vunpack.c.l.b16 %v204
    %v789 = vunpack.c.h.b16 %v204
    %v790 = vunpack.c.l.b16 %v205
    %v791 = vunpack.c.h.b16 %v205
    %v792 = vunpack.c.l.b16 %v206
    %v793 = vunpack.c.h.b16 %v206
    %v794 = vunpack.c.l.b16 %v207
    %v795 = vunpack.c.h.b16 %v207
    %v796 = vunpack.c.l.b16 %v208
    %v797 = vunpack.c.h.b16 %v208
    %v798 = vunpack.c.l.b16 %v209
    %v799 = vunpack.c.h.b16 %v209
    %v800 = vunpack.c.l.b16 %v210
    %v801 = vunpack.c.h.b16 %v210
    %v802 = vunpack.c.l.b16 %v211
    %v803 = vunpack.c.h.b16 %v211
    %v804 = vunpack.c.l.b16 %v212
    %v805 = vunpack.c.h.b16 %v212
    %v806 = vunpack.c.l.b16 %v213
    %v807 = vunpack.c.h.b16 %v213
    %v808 = vunpack.c.l.b16 %v214
    %v809 = vunpack.c.h.b16 %v214
    %v810 = vunpack.c.l.b16 %v215
    %v811 = vunpack.c.h.b16 %v215
    %v812 = vunpack.c.l.b16 %v216
    %v813 = vunpack.c.h.b16 %v216
    %v814 = vunpack.c.l.b16 %v217
    %v815 = vunpack.c.h.b16 %v217
    %v816 = vunpack.c.l.b16 %v218
    %v817 = vunpack.c.h.b16 %v218
    %v818 = vunpack.c.l.b16 %v219
    %v819 = vunpack.c.h.b16 %v219
    %v820 = vunpack.c.l.b16 %v220
    %v821 = vunpack.c.h.b16 %v220
    %v822 = vunpack.c.l.b16 %v221
    %v823 = vunpack.c.h.b16 %v221
    %v824 = vunpack.c.l.b16 %v222
    %v825 = vunpack.c.h.b16 %v222
    %v826 = vunpack.c.l.b16 %v223
    %v827 = vunpack.c.h.b16 %v223
    %v828 = vunpack.c.l.b16 %v224
    %v829 = vunpack.c.h.b16 %v224
    %v830 = vunpack.c.l.b16 %v225
    %v831 = vunpack.c.h.b16 %v225
    %v832 = vpack.c.b16 %v452, %v448
    %v833 = vpack.c.b16 %v453, %v449
    %v834 = vpack.c.b16 %v454, %v450
    %v835 = vpack.c.b16 %v455, %v451
    %v836 = vpack.c.b16 %v460, %v456
    %v837 = vpack.c.b16 %v461, %v457
    %v838 = vpack.c.b16 %v462, %v458
    %v839 = vpack.c.b16 %v463, %v459
    %v840 = vpack.c.b16 %v468, %v464
    %v841 = vpack.c.b16 %v469, %v465
    %v842 = vpack.c.b16 %v470, %v466
    %v843 = vpack.c.b16 %v471, %v467
    %v844 = vpack.c.b16 %v476, %v472
    %v845 = vpack.c.b16 %v477, %v473
    %v846 = vpack.c.b16 %v478, %v474
    %v847 = vpack.c.b16 %v479, %v475
    %v848 = vpack.c.b16 %v484, %v480
    %v849 = vpack.c.b16 %v485, %v481
    %v850 = vpack.c.b16 %v486, %v482
    %v851 = vpack.c.b16 %v487, %v483
    %v852 = vpack.c.b16 %v492, %v488
    %v853 = vpack.c.b16 %v493, %v489
    %v854 = vpack.c.b16 %v494, %v490
    %v855 = vpack.c.b16 %v495, %v491
    %v856 = vpack.c.b16 %v500, %v496
    %v857 = vpack.c.b16 %v501, %v497
    %v858 = vpack.c.b16 %v502, %v498
    %v859 = vpack.c.b16 %v503, %v499
    %v860 = vpack.c.b16 %v508, %v504
    %v861 = vpack.c.b16 %v509, %v505
    %v862 = vpack.c.b16 %v510, %v506
    %v863 = vpack.c.b16 %v511, %v507
    %v864 = vpack.c.b16 %v516, %v512
    %v865 = vpack.c.b16 %v517, %v513
    %v866 = vpack.c.b16 %v518, %v514
    %v867 = vpack.c.b16 %v519, %v515
    %v868 = vpack.c.b16 %v524, %v520
    %v869 = vpack.c.b16 %v525, %v521
    %v870 = vpack.c.b16 %v526, %v522
    %v871 = vpack.c.b16 %v527, %v523
    %v872 = vpack.c.b16 %v532, %v528
    %v873 = vpack.c.b16 %v533, %v529
    %v874 = vpack.c.b16 %v534, %v530
    %v875 = vpack.c.b16 %v535, %v531
    %v876 = vpack.c.b16 %v540, %v536
    %v877 = vpack.c.b16 %v541, %v537
    %v878 = vpack.c.b16 %v542, %v538
    %v879 = vpack.c.b16 %v543, %v539
    %v880 = vpack.c.b16 %v548, %v544
    %v881 = vpack.c.b16 %v549, %v545
    %v882 = vpack.c.b16 %v550, %v546
    %v883 = vpack.c.b16 %v551, %v547
    %v884 = vpack.c.b16 %v556, %v552
    %v885 = vpack.c.b16 %v557, %v553
    %v886 = vpack.c.b16 %v558, %v554
    %v887 = vpack.c.b16 %v559, %v555
    %v888 = vpack.c.b16 %v564, %v560
    %v889 = vpack.c.b16 %v565, %v561
    %v890 = vpack.c.b16 %v566, %v562
    %v891 = vpack.c.b16 %v567, %v563
    %v892 = vpack.c.b16 %v572, %v568
    %v893 = vpack.c.b16 %v573, %v569
    %v894 = vpack.c.b16 %v574, %v570
    %v895 = vpack.c.b16 %v575, %v571
    %v896 = vpack.c.b16 %v580, %v576
    %v897 = vpack.c.b16 %v581, %v577
    %v898 = vpack.c.b16 %v582, %v578
    %v899 = vpack.c.b16 %v583, %v579
    %v900 = vpack.c.b16 %v588, %v584
    %v901 = vpack.c.b16 %v589, %v585
    %v902 = vpack.c.b16 %v590, %v586
    %v903 = vpack.c.b16 %v591, %v587
    %v904 = vpack.c.b16 %v596, %v592
    %v905 = vpack.c.b16 %v597, %v593
    %v906 = vpack.c.b16 %v598, %v594
    %v907 = vpack.c.b16 %v599, %v595
    %v908 = vpack.c.b16 %v604, %v600
    %v909 = vpack.c.b16 %v605, %v601
    %v910 = vpack.c.b16 %v606, %v602
    %v911 = vpack.c.b16 %v607, %v603
    %v912 = vpack.c.b16 %v612, %v608
    %v913 = vpack.c.b16 %v613, %v609
    %v914 = vpack.c.b16 %v614, %v610
    %v915 = vpack.c.b16 %v615, %v611
    %v916 = vpack.c.b16 %v620, %v616
    %v917 = vpack.c.b16 %v621, %v617
    %v918 = vpack.c.b16 %v622, %v618
    %v919 = vpack.c.b16 %v623, %v619
    %v920 = vpack.c.b16 %v628, %v624
    %v921 = vpack.c.b16 %v629, %v625
    %v922 = vpack.c.b16 %v630, %v626
    %v923 = vpack.c.b16 %v631, %v627
    %v924 = vpack.c.b16 %v636, %v632
    %v925 = vpack.c.b16 %v637, %v633
    %v926 = vpack.c.b16 %v638, %v634
    %v927 = vpack.c.b16 %v639, %v635
    %v928 = vpack.c.b16 %v644, %v640
    %v929 = vpack.c.b16 %v645, %v641
    %v930 = vpack.c.b16 %v646, %v642
    %v931 = vpack.c.b16 %v647, %v643
    %v932 = vpack.c.b16 %v652, %v648
    %v933 = vpack.c.b16 %v653, %v649
    %v934 = vpack.c.b16 %v654, %v650
    %v935 = vpack.c.b16 %v655, %v651
    %v936 = vpack.c.b16 %v660, %v656
    %v937 = vpack.c.b16 %v661, %v657
    %v938 = vpack.c.b16 %v662, %v658
    %v939 = vpack.c.b16 %v663, %v659
    %v940 = vpack.c.b16 %v668, %v664
    %v941 = vpack.c.b16 %v669, %v665
    %v942 = vpack.c.b16 %v670, %v666
    %v943 = vpack.c.b16 %v671, %v667
    %v944 = vpack.c.b16 %v676, %v672
    %v945 = vpack.c.b16 %v677, %v673
    %v946 = vpack.c.b16 %v678, %v674
    %v947 = vpack.c.b16 %v679, %v675
    %v948 = vpack.c.b16 %v684, %v680
    %v949 = vpack.c.b16 %v685, %v681
    %v950 = vpack.c.b16 %v686, %v682
    %v951 = vpack.c.b16 %v687, %v683
    %v952 = vpack.c.b16 %v692, %v688
    %v953 = vpack.c.b16 %v693, %v689
    %v954 = vpack.c.b16 %v694, %v690
    %v955 = vpack.c.b16 %v695, %v691
    %v956 = vpack.c.b16 %v700, %v696
    %v957 = vpack.c.b16 %v701, %v697
    %v958 = vpack.c.b16 %v702, %v698
    %v959 = vpack.c.b16 %v703, %v699
    %v960 = vpack.c.b16 %v708, %v704
    %v961 = vpack.c.b16 %v709, %v705
    %v962 = vpack.c.b16 %v710, %v706
    %v963 = vpack.c.b16 %v711, %v707
    %v964 = vpack.c.b16 %v716, %v712
    %v965 = vpack.c.b16 %v717, %v713
    %v966 = vpack.c.b16 %v718, %v714
    %v967 = vpack.c.b16 %v719, %v715
    %v968 = vpack.c.b16 %v724, %v720
    %v969 = vpack.c.b16 %v725, %v721
    %v970 = vpack.c.b16 %v726, %v722
    %v971 = vpack.c.b16 %v727, %v723
    %v972 = vpack.c.b16 %v732, %v728
    %v973 = vpack.c.b16 %v733, %v729
    %v974 = vpack.c.b16 %v734, %v730
    %v975 = vpack.c.b16 %v735, %v731
    %v976 = vpack.c.b16 %v740, %v736
    %v977 = vpack.c.b16 %v741, %v737
    %v978 = vpack.c.b16 %v742, %v738
    %v979 = vpack.c.b16 %v743, %v739
    %v980 = vpack.c.b16 %v748, %v744
    %v981 = vpack.c.b16 %v749, %v745
    %v982 = vpack.c.b16 %v750, %v746
    %v983 = vpack.c.b16 %v751, %v747
    %v984 = vpack.c.b16 %v756, %v752
    %v985 = vpack.c.b16 %v757, %v753
    %v986 = vpack.c.b16 %v758, %v754
    %v987 = vpack.c.b16 %v759, %v755
    %v988 = vpack.c.b16 %v764, %v760
    %v989 = vpack.c.b16 %v765, %v761
    %v990 = vpack.c.b16 %v766, %v762
    %v991 = vpack.c.b16 %v767, %v763
    %v992 = vpack.c.b16 %v772, %v768
    %v993 = vpack.c.b16 %v773, %v769
    %v994 = vpack.c.b16 %v774, %v770
    %v995 = vpack.c.b16 %v775, %v771
    %v996 = vpack.c.b16 %v780, %v776
    %v997 = vpack.c.b16 %v781, %v777
    %v998 = vpack.c.b16 %v782, %v778
    %v999 = vpack.c.b16 %v783, %v779
    %v1000 = vpack.c.b16 %v788, %v784
    %v1001 = vpack.c.b16 %v789, %v785
    %v1002 = vpack.c.b16 %v790, %v786
    %v1003 = vpack.c.b16 %v791, %v787
    %v1004 = vpack.c.b16 %v796, %v792
    %v1005 = vpack.c.b16 %v797, %v793
    %v1006 = vpack.c.b16 %v798, %v794
    %v1007 = vpack.c.b16 %v799, %v795
    %v1008 = vpack.c.b16 %v804, %v800
    %v1009 = vpack.c.b16 %v805, %v801
    %v1010 = vpack.c.b16 %v806, %v802
    %v1011 = vpack.c.b16 %v807, %v803
    %v1012 = vpack.c.b16 %v812, %v808
    %v1013 = vpack.c.b16 %v813, %v809
    %v1014 = vpack.c.b16 %v814, %v810
    %v1015 = vpack.c.b16 %v815, %v811
    %v1016 = vpack.c.b16 %v820, %v816
    %v1017 = vpack.c.b16 %v821, %v817
    %v1018 = vpack.c.b16 %v822, %v818
    %v1019 = vpack.c.b16 %v823, %v819
    %v1020 = vpack.c.b16 %v828, %v824
    %v1021 = vpack.c.b16 %v829, %v825
    %v1022 = vpack.c.b16 %v830, %v826
    %v1023 = vpack.c.b16 %v831, %v827
    %1216 = vmatprep.subr.bf16.mxu0 %v833
    %1217 = vmatpush1.bf16.msra.mxu0 %v832
    %1218 = vmatprep.subr.bf16.mxu0 %v837
    %1219 = vmatpush1.bf16.msra.mxu0 %v836
    %1220 = vmatprep.subr.bf16.mxu0 %v841
    %1221 = vmatpush1.bf16.msra.mxu0 %v840
    %1222 = vmatprep.subr.bf16.mxu0 %v845
    %1223 = vmatpush1.bf16.msra.mxu0 %v844
    %1224 = vmatprep.subr.bf16.mxu0 %v849
    %1225 = vmatpush1.bf16.msra.mxu0 %v848
    %1226 = vmatprep.subr.bf16.mxu0 %v853
    %1227 = vmatpush1.bf16.msra.mxu0 %v852
    %1228 = vmatprep.subr.bf16.mxu0 %v857
    %1229 = vmatpush1.bf16.msra.mxu0 %v856
    %1230 = vmatprep.subr.bf16.mxu0 %v861
    %1231 = vmatpush1.bf16.msra.mxu0 %v860
    %1232 = vmatprep.subr.bf16.mxu0 %v865
    %1233 = vmatpush1.bf16.msra.mxu0 %v864
    %1234 = vmatprep.subr.bf16.mxu0 %v869
    %1235 = vmatpush1.bf16.msra.mxu0 %v868
    %1236 = vmatprep.subr.bf16.mxu0 %v873
    %1237 = vmatpush1.bf16.msra.mxu0 %v872
    %1238 = vmatprep.subr.bf16.mxu0 %v877
    %1239 = vmatpush1.bf16.msra.mxu0 %v876
    %1240 = vmatprep.subr.bf16.mxu0 %v881
    %1241 = vmatpush1.bf16.msra.mxu0 %v880
    %1242 = vmatprep.subr.bf16.mxu0 %v885
    %1243 = vmatpush1.bf16.msra.mxu0 %v884
    %1244 = vmatprep.subr.bf16.mxu0 %v889
    %1245 = vmatpush1.bf16.msra.mxu0 %v888
    %1246 = vmatprep.subr.bf16.mxu0 %v893
    %1247 = vmatpush1.bf16.msra.mxu0 %v892
    %1248 = vmatprep.mubr.bf16.mxu0 %v245
    %1249 = vmatmul.mubr.bf16.gmra.mrb[0].mxu0 %v244
    %v1250 = vpop.f32.mrb[0].mxu0
    %v1251 = vadd.f32 0.0, %v1250
    %v1252 = vpop.f32.mrb[0].mxu0
    %v1253 = vadd.f32 0.0, %v1252
    %v1254 = vpop.f32.mrb[0].mxu0
    %v1255 = vadd.f32 0.0, %v1254
    %v1256 = vpop.f32.mrb[0].mxu0
    %v1257 = vadd.f32 0.0, %v1256
    %1258 = vdwg.mxu0
    %1259 = vmatprep.subr.bf16.mxu0 %v897
    %1260 = vmatpush1.bf16.msra.mxu0 %v896
    %1261 = vmatprep.subr.bf16.mxu0 %v901
    %1262 = vmatpush1.bf16.msra.mxu0 %v900
    %1263 = vmatprep.subr.bf16.mxu0 %v905
    %1264 = vmatpush1.bf16.msra.mxu0 %v904
    %1265 = vmatprep.subr.bf16.mxu0 %v909
    %1266 = vmatpush1.bf16.msra.mxu0 %v908
    %1267 = vmatprep.subr.bf16.mxu0 %v913
    %1268 = vmatpush1.bf16.msra.mxu0 %v912
    %1269 = vmatprep.subr.bf16.mxu0 %v917
    %1270 = vmatpush1.bf16.msra.mxu0 %v916
    %1271 = vmatprep.subr.bf16.mxu0 %v921
    %1272 = vmatpush1.bf16.msra.mxu0 %v920
    %1273 = vmatprep.subr.bf16.mxu0 %v925
    %1274 = vmatpush1.bf16.msra.mxu0 %v924
    %1275 = vmatprep.subr.bf16.mxu0 %v929
    %1276 = vmatpush1.bf16.msra.mxu0 %v928
    %1277 = vmatprep.subr.bf16.mxu0 %v933
    %1278 = vmatpush1.bf16.msra.mxu0 %v932
    %1279 = vmatprep.subr.bf16.mxu0 %v937
    %1280 = vmatpush1.bf16.msra.mxu0 %v936
    %1281 = vmatprep.subr.bf16.mxu0 %v941
    %1282 = vmatpush1.bf16.msra.mxu0 %v940
    %1283 = vmatprep.subr.bf16.mxu0 %v945
    %1284 = vmatpush1.bf16.msra.mxu0 %v944
    %1285 = vmatprep.subr.bf16.mxu0 %v949
    %1286 = vmatpush1.bf16.msra.mxu0 %v948
    %1287 = vmatprep.subr.bf16.mxu0 %v953
    %1288 = vmatpush1.bf16.msra.mxu0 %v952
    %1289 = vmatprep.subr.bf16.mxu0 %v957
    %1290 = vmatpush1.bf16.msra.mxu0 %v956
    %1291 = vmatprep.mubr.bf16.mxu0 %v247
    %1292 = vmatmul.mubr.bf16.gmra.mrb[0].mxu0 %v246
    %v1293 = vpop.f32.mrb[0].mxu0
    %v1294 = vadd.f32 %v1251, %v1293
    %v1295 = vpop.f32.mrb[0].mxu0
    %v1296 = vadd.f32 %v1253, %v1295
    %v1297 = vpop.f32.mrb[0].mxu0
    %v1298 = vadd.f32 %v1255, %v1297
    %v1299 = vpop.f32.mrb[0].mxu0
    %v1300 = vadd.f32 %v1257, %v1299
    %1301 = vdwg.mxu0
    %1302 = vmatprep.subr.bf16.mxu0 %v961
    %1303 = vmatpush1.bf16.msra.mxu0 %v960
    %1304 = vmatprep.subr.bf16.mxu0 %v965
    %1305 = vmatpush1.bf16.msra.mxu0 %v964
    %1306 = vmatprep.subr.bf16.mxu0 %v969
    %1307 = vmatpush1.bf16.msra.mxu0 %v968
    %1308 = vmatprep.subr.bf16.mxu0 %v973
    %1309 = vmatpush1.bf16.msra.mxu0 %v972
    %1310 = vmatprep.subr.bf16.mxu0 %v977
    %1311 = vmatpush1.bf16.msra.mxu0 %v976
    %1312 = vmatprep.subr.bf16.mxu0 %v981
    %1313 = vmatpush1.bf16.msra.mxu0 %v980
    %1314 = vmatprep.subr.bf16.mxu0 %v985
    %1315 = vmatpush1.bf16.msra.mxu0 %v984
    %1316 = vmatprep.subr.bf16.mxu0 %v989
    %1317 = vmatpush1.bf16.msra.mxu0 %v988
    %1318 = vmatprep.subr.bf16.mxu0 %v993
    %1319 = vmatpush1.bf16.msra.mxu0 %v992
    %1320 = vmatprep.subr.bf16.mxu0 %v997
    %1321 = vmatpush1.bf16.msra.mxu0 %v996
    %1322 = vmatprep.subr.bf16.mxu0 %v1001
    %1323 = vmatpush1.bf16.msra.mxu0 %v1000
    %1324 = vmatprep.subr.bf16.mxu0 %v1005
    %1325 = vmatpush1.bf16.msra.mxu0 %v1004
    %1326 = vmatprep.subr.bf16.mxu0 %v1009
    %1327 = vmatpush1.bf16.msra.mxu0 %v1008
    %1328 = vmatprep.subr.bf16.mxu0 %v1013
    %1329 = vmatpush1.bf16.msra.mxu0 %v1012
    %1330 = vmatprep.subr.bf16.mxu0 %v1017
    %1331 = vmatpush1.bf16.msra.mxu0 %v1016
    %1332 = vmatprep.subr.bf16.mxu0 %v1021
    %1333 = vmatpush1.bf16.msra.mxu0 %v1020
    %1334 = vmatprep.mubr.bf16.mxu0 %v249
    %1335 = vmatmul.mubr.bf16.gmra.mrb[0].mxu0 %v248
    %v1336 = vpop.f32.mrb[0].mxu0
    %v1337 = vadd.f32 %v1294, %v1336
    %v1338 = vpop.f32.mrb[0].mxu0
    %v1339 = vadd.f32 %v1296, %v1338
    %v1340 = vpop.f32.mrb[0].mxu0
    %v1341 = vadd.f32 %v1298, %v1340
    %v1342 = vpop.f32.mrb[0].mxu0
    %v1343 = vadd.f32 %v1300, %v1342
    %1344 = vdwg.mxu0
    %1345 = vmatprep.subr.bf16.mxu0 %v835
    %1346 = vmatpush1.bf16.msra.mxu0 %v834
    %1347 = vmatprep.subr.bf16.mxu0 %v839
    %1348 = vmatpush1.bf16.msra.mxu0 %v838
    %1349 = vmatprep.subr.bf16.mxu0 %v843
    %1350 = vmatpush1.bf16.msra.mxu0 %v842
    %1351 = vmatprep.subr.bf16.mxu0 %v847
    %1352 = vmatpush1.bf16.msra.mxu0 %v846
    %1353 = vmatprep.subr.bf16.mxu0 %v851
    %1354 = vmatpush1.bf16.msra.mxu0 %v850
    %1355 = vmatprep.subr.bf16.mxu0 %v855
    %1356 = vmatpush1.bf16.msra.mxu0 %v854
    %1357 = vmatprep.subr.bf16.mxu0 %v859
    %1358 = vmatpush1.bf16.msra.mxu0 %v858
    %1359 = vmatprep.subr.bf16.mxu0 %v863
    %1360 = vmatpush1.bf16.msra.mxu0 %v862
    %1361 = vmatprep.subr.bf16.mxu0 %v867
    %1362 = vmatpush1.bf16.msra.mxu0 %v866
    %1363 = vmatprep.subr.bf16.mxu0 %v871
    %1364 = vmatpush1.bf16.msra.mxu0 %v870
    %1365 = vmatprep.subr.bf16.mxu0 %v875
    %1366 = vmatpush1.bf16.msra.mxu0 %v874
    %1367 = vmatprep.subr.bf16.mxu0 %v879
    %1368 = vmatpush1.bf16.msra.mxu0 %v878
    %1369 = vmatprep.subr.bf16.mxu0 %v883
    %1370 = vmatpush1.bf16.msra.mxu0 %v882
    %1371 = vmatprep.subr.bf16.mxu0 %v887
    %1372 = vmatpush1.bf16.msra.mxu0 %v886
    %1373 = vmatprep.subr.bf16.mxu0 %v891
    %1374 = vmatpush1.bf16.msra.mxu0 %v890
    %1375 = vmatprep.subr.bf16.mxu0 %v895
    %1376 = vmatpush1.bf16.msra.mxu0 %v894
    %1377 = vmatprep.mubr.bf16.mxu0 %v245
    %1378 = vmatmul.mubr.bf16.gmra.mrb[0].mxu0 %v244
    %v1379 = vpop.f32.mrb[0].mxu0
    %v1380 = vadd.f32 0.0, %v1379
    %v1381 = vpop.f32.mrb[0].mxu0
    %v1382 = vadd.f32 0.0, %v1381
    %v1383 = vpop.f32.mrb[0].mxu0
    %v1384 = vadd.f32 0.0, %v1383
    %v1385 = vpop.f32.mrb[0].mxu0
    %v1386 = vadd.f32 0.0, %v1385
    %1387 = vdwg.mxu0
    %1388 = vmatprep.subr.bf16.mxu0 %v899
    %1389 = vmatpush1.bf16.msra.mxu0 %v898
    %1390 = vmatprep.subr.bf16.mxu0 %v903
    %1391 = vmatpush1.bf16.msra.mxu0 %v902
    %1392 = vmatprep.subr.bf16.mxu0 %v907
    %1393 = vmatpush1.bf16.msra.mxu0 %v906
    %1394 = vmatprep.subr.bf16.mxu0 %v911
    %1395 = vmatpush1.bf16.msra.mxu0 %v910
    %1396 = vmatprep.subr.bf16.mxu0 %v915
    %1397 = vmatpush1.bf16.msra.mxu0 %v914
    %1398 = vmatprep.subr.bf16.mxu0 %v919
    %1399 = vmatpush1.bf16.msra.mxu0 %v918
    %1400 = vmatprep.subr.bf16.mxu0 %v923
    %1401 = vmatpush1.bf16.msra.mxu0 %v922
    %1402 = vmatprep.subr.bf16.mxu0 %v927
    %1403 = vmatpush1.bf16.msra.mxu0 %v926
    %1404 = vmatprep.subr.bf16.mxu0 %v931
    %1405 = vmatpush1.bf16.msra.mxu0 %v930
    %1406 = vmatprep.subr.bf16.mxu0 %v935
    %1407 = vmatpush1.bf16.msra.mxu0 %v934
    %1408 = vmatprep.subr.bf16.mxu0 %v939
    %1409 = vmatpush1.bf16.msra.mxu0 %v938
    %1410 = vmatprep.subr.bf16.mxu0 %v943
    %1411 = vmatpush1.bf16.msra.mxu0 %v942
    %1412 = vmatprep.subr.bf16.mxu0 %v947
    %1413 = vmatpush1.bf16.msra.mxu0 %v946
    %1414 = vmatprep.subr.bf16.mxu0 %v951
    %1415 = vmatpush1.bf16.msra.mxu0 %v950
    %1416 = vmatprep.subr.bf16.mxu0 %v955
    %1417 = vmatpush1.bf16.msra.mxu0 %v954
    %1418 = vmatprep.subr.bf16.mxu0 %v959
    %1419 = vmatpush1.bf16.msra.mxu0 %v958
    %1420 = vmatprep.mubr.bf16.mxu0 %v247
    %1421 = vmatmul.mubr.bf16.gmra.mrb[0].mxu0 %v246
    %v1422 = vpop.f32.mrb[0].mxu0
    %v1423 = vadd.f32 %v1380, %v1422
    %v1424 = vpop.f32.mrb[0].mxu0
    %v1425 = vadd.f32 %v1382, %v1424
    %v1426 = vpop.f32.mrb[0].mxu0
    %v1427 = vadd.f32 %v1384, %v1426
    %v1428 = vpop.f32.mrb[0].mxu0
    %v1429 = vadd.f32 %v1386, %v1428
    %1430 = vdwg.mxu0
    %1431 = vmatprep.subr.bf16.mxu0 %v963
    %1432 = vmatpush1.bf16.msra.mxu0 %v962
    %1433 = vmatprep.subr.bf16.mxu0 %v967
    %1434 = vmatpush1.bf16.msra.mxu0 %v966
    %1435 = vmatprep.subr.bf16.mxu0 %v971
    %1436 = vmatpush1.bf16.msra.mxu0 %v970
    %1437 = vmatprep.subr.bf16.mxu0 %v975
    %1438 = vmatpush1.bf16.msra.mxu0 %v974
    %1439 = vmatprep.subr.bf16.mxu0 %v979
    %1440 = vmatpush1.bf16.msra.mxu0 %v978
    %1441 = vmatprep.subr.bf16.mxu0 %v983
    %1442 = vmatpush1.bf16.msra.mxu0 %v982
    %1443 = vmatprep.subr.bf16.mxu0 %v987
    %1444 = vmatpush1.bf16.msra.mxu0 %v986
    %1445 = vmatprep.subr.bf16.mxu0 %v991
    %1446 = vmatpush1.bf16.msra.mxu0 %v990
    %1447 = vmatprep.subr.bf16.mxu0 %v995
    %1448 = vmatpush1.bf16.msra.mxu0 %v994
    %1449 = vmatprep.subr.bf16.mxu0 %v999
    %1450 = vmatpush1.bf16.msra.mxu0 %v998
    %1451 = vmatprep.subr.bf16.mxu0 %v1003
    %1452 = vmatpush1.bf16.msra.mxu0 %v1002
    %1453 = vmatprep.subr.bf16.mxu0 %v1007
    %1454 = vmatpush1.bf16.msra.mxu0 %v1006
    %1455 = vmatprep.subr.bf16.mxu0 %v1011
    %1456 = vmatpush1.bf16.msra.mxu0 %v1010
    %1457 = vmatprep.subr.bf16.mxu0 %v1015
    %1458 = vmatpush1.bf16.msra.mxu0 %v1014
    %1459 = vmatprep.subr.bf16.mxu0 %v1019
    %1460 = vmatpush1.bf16.msra.mxu0 %v1018
    %1461 = vmatprep.subr.bf16.mxu0 %v1023
    %1462 = vmatpush1.bf16.msra.mxu0 %v1022
    %1463 = vmatprep.mubr.bf16.mxu0 %v249
    %1464 = vmatmul.mubr.bf16.gmra.mrb[0].mxu0 %v248
    %v1465 = vpop.f32.mrb[0].mxu0
    %v1466 = vadd.f32 %v1423, %v1465
    %v1467 = vpop.f32.mrb[0].mxu0
    %v1468 = vadd.f32 %v1425, %v1467
    %v1469 = vpop.f32.mrb[0].mxu0
    %v1470 = vadd.f32 %v1427, %v1469
    %v1471 = vpop.f32.mrb[0].mxu0
    %v1472 = vadd.f32 %v1429, %v1471
    %1473 = vdwg.mxu0
    %v1474 = vmax.f32 %v1337, %v1466
    %v1475 = vmax.f32 %v1339, %v1468
    %v1476 = vmax.f32 %v1341, %v1470
    %v1477 = vmax.f32 %v1343, %v1472
    %v1478 = vmax.f32 %v1474, %v1475
    %v1479 = vmax.f32 %v1476, %v1477
    %v1480 = vld [vmem:[%s2] sm:$0x1]
    %v1482 = vlaneseq
    %v1483 = vshrl.u32 %v1482, 7
    %v1484 = vsub.s32 0, %v1483
    %v1485 = vrot.slane %v1480, %v1484
    %v1487 = vadd.f32 %v1478, %v1485
    %v1488 = vadd.f32 %v1479, %v1485
    %v1489 = vmul.f32 %v1487, 0.01
    %v1490 = vmul.f32 %v1488, 0.01
    %v1491 = vmax.f32 %v1487, %v1489
    %v1492 = vmax.f32 %v1488, %v1490
    %v1493 = vpack.c.bf16 %v1492, %v1491
    %v1495 = vunpack.c.l.b16 %v1493
    %v1496 = vunpack.c.h.b16 %v1493
    %v1497 = vpack.c.b16 %v1495, %v1495
    %v1498 = vpack.c.b16 %v1496, %v1496
    %1501 = vst [vmem:[%s3] sm:$0xf] %v1497
    %1502 = vst [vmem:[%s3 + $0x4] sm:$0xf] %v1498
    // Predicated region
    $region18: #{lenet_forward.4} parent=1 // pred_check
      _
    $region19: #{lenet_forward.4} parent=1 // pred_check_branch
      %1504 = sbr.rel (0) target = $region21
    $region20: #{lenet_forward.4} parent=1 // pred_region
      _
    $region21: #{lenet_forward.4} parent=1 // pred_fallthru
      _
    // Predicated region
    $region22: #{lenet_forward.4} parent=1 // pred_check
      _
    $region23: #{lenet_forward.4} parent=1 // pred_check_branch
      %1506 = sbr.rel (0) target = $region25
    $region24: #{lenet_forward.4} parent=1 // pred_region
      _
    $region25: #{lenet_forward.4} parent=1 // pred_fallthru
      _
    %1507 = vsyncpa [#allocation3], 1

</llo_original>
